<compile_context>
chip_gen: v6e
topology: v6e:2x2x1
jax: 0.10.0
libtpu: 0.0.40
codegen_flags: <defaults>
</compile_context>

<pallas_src>
from functools import partial

import jax
import jax.numpy as jnp
from jax.experimental import pallas as pl
from jax.experimental.pallas import tpu as pltpu

IN_F, HID, OUT_F = 50, 400, 784          # logical sizes from the PyTorch module
IN_PAD, HID_PAD, OUT_PAD = 64, 512, 896  # MXU/lane-aligned padded sizes
ALIGN = 16                               # bf16 sublane packing (16, 128)


def _round_up(x, m):
    return ((x + m - 1) // m) * m


def _cdiv(a, b):
    return -(-a // b)


def _default_out_dtype():
    """bf16 sigmoid/output on v6e/v7x, f32 on older generations (v5e etc.)."""
    try:
        kind = jax.devices()[0].device_kind.lower()
    except Exception:
        return jnp.float32
    if any(tag in kind for tag in ("v6", "v7", "7x")):
        return jnp.bfloat16
    return jnp.float32


def decoder_kernel(x_ref, wglu_ref, bglu_ref, w2_ref, b2_ref, o_ref):
    """One batch tile of the decoder.

    x_ref   : (TB, 64)        bf16  input (features zero-padded 50->64)
    wglu_ref: (64, 1024)      bf16  [Ws | Wg], each branch padded 400->512
    bglu_ref: (1, 1024)       f32   [bs | bg], padded with zeros
    w2_ref  : (512, 896)      bf16  fc2 weight, zero-padded
    b2_ref  : (1, 896)        f32   fc2 bias, zero-padded
    o_ref   : (TB, 896)       f32 or bf16 output (cols 784..895 are pad)
    """
    # Single fused GLU matmul on the MXU (bf16 inputs, f32 accumulation).
    lin = jnp.dot(x_ref[...], wglu_ref[...], preferred_element_type=jnp.float32)
    lin = lin + bglu_ref[...]                        # (TB, 1024) f32

    # Split at the 512 (4x128 lane) boundary: free static slices.
    s = jax.nn.sigmoid(lin[:, :HID_PAD])             # sigmoid branch, f32
    g = jnp.maximum(lin[:, HID_PAD:], 0.0)           # relu branch, f32
    h = s * g                                        # (TB, 512); padded cols are 0

    # fc2 (bf16 MXU matmul, f32 accumulation) + sigmoid.
    y = jnp.dot(h.astype(jnp.bfloat16), w2_ref[...],
                preferred_element_type=jnp.float32) + b2_ref[...]

    if o_ref.dtype == jnp.bfloat16:                  # v6e/v7x: bf16 EUP + bf16 store
        y = y.astype(jnp.bfloat16)
    o_ref[...] = jax.nn.sigmoid(y).astype(o_ref.dtype)


def pack_params(params):
    """Pack f32 module params into the padded/fused bf16 kernel layout."""
    ws, bs, wg, bg, w2, b2 = params

    w_glu = jnp.zeros((IN_PAD, 2 * HID_PAD), jnp.float32)
    w_glu = w_glu.at[:IN_F, :HID].set(ws)
    w_glu = w_glu.at[:IN_F, HID_PAD:HID_PAD + HID].set(wg)

    b_glu = jnp.zeros((1, 2 * HID_PAD), jnp.float32)
    b_glu = b_glu.at[:, :HID].set(bs)
    b_glu = b_glu.at[:, HID_PAD:HID_PAD + HID].set(bg)

    w2_p = jnp.zeros((HID_PAD, OUT_PAD), jnp.float32).at[:HID, :OUT_F].set(w2)
    b2_p = jnp.zeros((1, OUT_PAD), jnp.float32).at[:, :OUT_F].set(b2)

    return (w_glu.astype(jnp.bfloat16), b_glu,
            w2_p.astype(jnp.bfloat16), b2_p)


@partial(jax.jit, static_argnames=("out_dtype",))
def decoder_forward_padded(x, packed, out_dtype=jnp.float32):
    """x: (B, 50) f32 -> (b_pad, 896) out_dtype (rows >= B and cols >= 784 are pad).

    Returning the padded buffer avoids an extra read+write of the output in a
    separate XLA slice op; consumers slice lazily (or use decoder_forward).
    """
    w_glu, b_glu, w2_p, b2_p = packed
    B = x.shape[0]

    # Batch tile: up to 512 rows (fills the v6e/v7x 256x256 MXU M dim and
    # amortizes per-grid-step overhead).  If more than one tile is needed,
    # keep the grid-step count even so v7x's two TensorCores stay balanced.
    tb = min(512, _round_up(B, ALIGN))
    nb = _cdiv(B, tb)
    if nb > 1 and nb % 2 == 1:
        nb += 1
        tb = _round_up(_cdiv(B, nb), ALIGN)
    b_pad = nb * tb

    # Zero-pad batch + input features and cast to bf16 once in the wrapper
    # (halves the x-tile DMA; removes the in-kernel cast).
    x_p = jnp.zeros((b_pad, IN_PAD), jnp.bfloat16).at[:B, :IN_F].set(
        x.astype(jnp.bfloat16))

    out_itemsize = jnp.dtype(out_dtype).itemsize
    # Double-buffered block working set + headroom for in-kernel intermediates.
    block_bytes = (tb * IN_PAD * 2              # x tile (bf16)
                   + IN_PAD * 2 * HID_PAD * 2   # fused GLU weight (bf16)
                   + 2 * HID_PAD * 4            # fused GLU bias (f32)
                   + HID_PAD * OUT_PAD * 2      # fc2 weight (bf16)
                   + OUT_PAD * 4                # fc2 bias (f32)
                   + tb * OUT_PAD * out_itemsize)
    vmem_bytes = int(max(2 * block_bytes + (12 << 20), 16 << 20))

    return pl.pallas_call(
        decoder_kernel,
        out_shape=jax.ShapeDtypeStruct((b_pad, OUT_PAD), out_dtype),
        grid=(nb,),
        in_specs=[
            pl.BlockSpec((tb, IN_PAD), lambda i: (i, 0)),
            pl.BlockSpec((IN_PAD, 2 * HID_PAD), lambda i: (0, 0)),  # VMEM-resident
            pl.BlockSpec((1, 2 * HID_PAD), lambda i: (0, 0)),
            pl.BlockSpec((HID_PAD, OUT_PAD), lambda i: (0, 0)),
            pl.BlockSpec((1, OUT_PAD), lambda i: (0, 0)),
        ],
        out_specs=pl.BlockSpec((tb, OUT_PAD), lambda i: (i, 0)),
        compiler_params=pltpu.CompilerParams(
            dimension_semantics=("parallel",),   # shards batch tiles on v7x's 2 TCs
            vmem_limit_bytes=vmem_bytes,
        ),
    )(x_p, w_glu, b_glu, w2_p, b2_p)


def decoder_forward(x, packed, out_dtype=jnp.float32):
    """Module-compatible API: (B, 50) -> (B, 784).  The slice costs an extra
    output read+write in a separate XLA op; prefer decoder_forward_padded when
    the consumer can handle the padded layout."""
    B = x.shape[0]
    return decoder_forward_padded(x, packed, out_dtype=out_dtype)[:B, :OUT_F]


def init_params(key):
    """PyTorch-like uniform(-1/sqrt(fan_in), +1/sqrt(fan_in)) init, f32."""
    ks = jax.random.split(key, 6)

    def linear(kw, kb, fan_in, fan_out):
        bound = 1.0 / jnp.sqrt(jnp.float32(fan_in))
        w = jax.random.uniform(kw, (fan_in, fan_out), jnp.float32, -bound, bound)
        b = jax.random.uniform(kb, (1, fan_out), jnp.float32, -bound, bound)
        return w, b

    ws, bs = linear(ks[0], ks[1], IN_F, HID)     # GLU.s
    wg, bg = linear(ks[2], ks[3], IN_F, HID)     # GLU.g
    w2, b2 = linear(ks[4], ks[5], HID, OUT_F)    # fc2
    return ws, bs, wg, bg, w2, b2


def reference_matched(x, packed, out_dtype):
    """Plain-JAX reference mirroring the kernel's bf16 casts exactly."""
    w_glu, b_glu, w2_p, b2_p = packed
    B = x.shape[0]
    xb = jnp.zeros((B, IN_PAD), jnp.float32).at[:, :IN_F].set(x)
    xb = xb.astype(jnp.bfloat16).astype(jnp.float32)
    lin = xb @ w_glu.astype(jnp.float32) + b_glu
    s = jax.nn.sigmoid(lin[:, :HID_PAD])
    g = jnp.maximum(lin[:, HID_PAD:], 0.0)
    h = (s * g).astype(jnp.bfloat16).astype(jnp.float32)
    y = h @ w2_p.astype(jnp.float32) + b2_p
    if out_dtype == jnp.bfloat16:
        y = y.astype(jnp.bfloat16)
    return jax.nn.sigmoid(y).astype(jnp.float32)[:, :OUT_F]


def reference_f32(x, params):
    """Original-module semantics in pure f32 (sanity check, looser tolerance)."""
    ws, bs, wg, bg, w2, b2 = params
    s = jax.nn.sigmoid(x @ ws + bs)
    g = jnp.maximum(x @ wg + bg, 0.0)
    h = s * g
    return jax.nn.sigmoid(h @ w2 + b2)


if __name__ == "__main__":
    key = jax.random.PRNGKey(0)
    k_param, k_x = jax.random.split(key)

    params = init_params(k_param)
    packed = pack_params(params)

    B = 8
    x = jax.random.normal(k_x, (B, IN_F), jnp.float32)

    out_dtype = _default_out_dtype()

    # Kernel returns the padded, lane-dense buffer; slice outside the hot path.
    out_pad = decoder_forward_padded(x, packed, out_dtype=out_dtype)
    out_pad = jax.block_until_ready(out_pad)
    out = jnp.asarray(out_pad[:B, :OUT_F], jnp.float32)

    ref_m = reference_matched(x, packed, out_dtype)
    ref_f = reference_f32(x, params)

    assert out.shape == (B, OUT_F), out.shape
    tol_matched = 2e-5 if out_dtype == jnp.float32 else 2e-2
    assert jnp.allclose(out, ref_m, atol=tol_matched, rtol=tol_matched), \
        "mismatch vs matched (bf16-cast) reference"
    assert jnp.allclose(out, ref_f, atol=3e-2, rtol=3e-2), \
        "mismatch vs f32 module semantics"

    print("KERNEL_OK")
</pallas_src>

<mosaic_0001>
module attributes {stable_mosaic.version = 11 : i64} {
  func.func @decoder_kernel(%arg0: i32, %arg1: memref<16x64xbf16, #tpu.memory_space<vmem>>, %arg2: memref<64x1024xbf16, #tpu.memory_space<vmem>>, %arg3: memref<1x1024xf32, #tpu.memory_space<vmem>>, %arg4: memref<512x896xbf16, #tpu.memory_space<vmem>>, %arg5: memref<1x896xf32, #tpu.memory_space<vmem>>, %arg6: memref<16x896xf32, #tpu.memory_space<vmem>>) attributes {dimension_semantics = [#tpu.dimension_semantics<parallel>], iteration_bounds = array<i64: 1>, scalar_prefetch = 0 : i64, scratch_operands = 0 : i64, tpu.core_type = #tpu.core_type<tc>, window_params = [{transform_indices = @transform_0, window_bounds = array<i64: 16, 64>}, {pipeline_mode = #tpu.pipeline_mode<synchronous>, transform_indices = @transform_1, window_bounds = array<i64: 64, 1024>}, {pipeline_mode = #tpu.pipeline_mode<synchronous>, transform_indices = @transform_2, window_bounds = array<i64: 1, 1024>}, {pipeline_mode = #tpu.pipeline_mode<synchronous>, transform_indices = @transform_3, window_bounds = array<i64: 512, 896>}, {pipeline_mode = #tpu.pipeline_mode<synchronous>, transform_indices = @transform_4, window_bounds = array<i64: 1, 896>}, {transform_indices = @transform_5, window_bounds = array<i64: 16, 896>}]} {
    %c0 = arith.constant 0 : index
    %c0_0 = arith.constant 0 : index
    %0 = vector.load %arg1[%c0, %c0_0] : memref<16x64xbf16, #tpu.memory_space<vmem>>, vector<16x64xbf16>
    %c0_1 = arith.constant 0 : index
    %c0_2 = arith.constant 0 : index
    %1 = vector.load %arg2[%c0_1, %c0_2] : memref<64x1024xbf16, #tpu.memory_space<vmem>>, vector<64x1024xbf16>
    %cst = arith.constant dense<0.000000e+00> : vector<16x1024xf32>
    %2 = tpu.matmul %0, %1, %cst {dimension_numbers = #tpu.dot_dimension_numbers<[1], [0], [0], [1], [0, 0, 1, 1], [], []>} : vector<16x64xbf16>, vector<64x1024xbf16>, vector<16x1024xf32> -> vector<16x1024xf32>
    %c0_3 = arith.constant 0 : index
    %c0_4 = arith.constant 0 : index
    %3 = vector.load %arg3[%c0_3, %c0_4] : memref<1x1024xf32, #tpu.memory_space<vmem>>, vector<1x1024xf32>
    %4 = vector.broadcast %3 : vector<1x1024xf32> to vector<16x1024xf32>
    %5 = arith.addf %2, %4 : vector<16x1024xf32>
    %6 = vector.extract_strided_slice %5 {offsets = [0, 0], sizes = [16, 512], strides = [1, 1]} : vector<16x1024xf32> to vector<16x512xf32>
    %7 = arith.negf %6 : vector<16x512xf32>
    %8 = math.exp %7 : vector<16x512xf32>
    %cst_5 = arith.constant 1.000000e+00 : f32
    %9 = vector.broadcast %cst_5 : f32 to vector<16x512xf32>
    %10 = arith.addf %9, %8 : vector<16x512xf32>
    %11 = arith.divf %9, %10 : vector<16x512xf32>
    %12 = vector.extract_strided_slice %5 {offsets = [0, 512], sizes = [16, 512], strides = [1, 1]} : vector<16x1024xf32> to vector<16x512xf32>
    %cst_6 = arith.constant 0.000000e+00 : f32
    %13 = vector.broadcast %cst_6 : f32 to vector<16x512xf32>
    %14 = arith.maximumf %12, %13 : vector<16x512xf32>
    %15 = arith.mulf %11, %14 : vector<16x512xf32>
    %16 = arith.truncf %15 : vector<16x512xf32> to vector<16x512xbf16>
    %c0_7 = arith.constant 0 : index
    %c0_8 = arith.constant 0 : index
    %17 = vector.load %arg4[%c0_7, %c0_8] : memref<512x896xbf16, #tpu.memory_space<vmem>>, vector<512x896xbf16>
    %cst_9 = arith.constant dense<0.000000e+00> : vector<16x896xf32>
    %18 = tpu.matmul %16, %17, %cst_9 {dimension_numbers = #tpu.dot_dimension_numbers<[1], [0], [0], [1], [0, 0, 1, 1], [], []>} : vector<16x512xbf16>, vector<512x896xbf16>, vector<16x896xf32> -> vector<16x896xf32>
    %c0_10 = arith.constant 0 : index
    %c0_11 = arith.constant 0 : index
    %19 = vector.load %arg5[%c0_10, %c0_11] : memref<1x896xf32, #tpu.memory_space<vmem>>, vector<1x896xf32>
    %20 = vector.broadcast %19 : vector<1x896xf32> to vector<16x896xf32>
    %21 = arith.addf %18, %20 : vector<16x896xf32>
    %22 = arith.negf %21 : vector<16x896xf32>
    %23 = math.exp %22 : vector<16x896xf32>
    %cst_12 = arith.constant 1.000000e+00 : f32
    %24 = vector.broadcast %cst_12 : f32 to vector<16x896xf32>
    %25 = arith.addf %24, %23 : vector<16x896xf32>
    %26 = arith.divf %24, %25 : vector<16x896xf32>
    %c0_13 = arith.constant 0 : index
    %c0_14 = arith.constant 0 : index
    %27 = vector.load %arg6[%c0_13, %c0_14] : memref<16x896xf32, #tpu.memory_space<vmem>>, vector<16x896xf32>
    tpu.vector_store %arg6[%c0_13, %c0_14], %26 {strides = array<i32>} : memref<16x896xf32, #tpu.memory_space<vmem>>, vector<16x896xf32>,
    return
  }
  func.func @transform_0(%arg0: i32) -> (i32, i32) {
    %c0_i32 = arith.constant 0 : i32
    %c0_i32_0 = arith.constant 0 : i32
    return %arg0, %c0_i32 : i32, i32
  }
  func.func @transform_1(%arg0: i32) -> (i32, i32) {
    %c0_i32 = arith.constant 0 : i32
    %c0_i32_0 = arith.constant 0 : i32
    %c0_i32_1 = arith.constant 0 : i32
    return %c0_i32, %c0_i32_0 : i32, i32
  }
  func.func @transform_2(%arg0: i32) -> (i32, i32) {
    %c0_i32 = arith.constant 0 : i32
    %c0_i32_0 = arith.constant 0 : i32
    %c0_i32_1 = arith.constant 0 : i32
    return %c0_i32, %c0_i32_0 : i32, i32
  }
  func.func @transform_3(%arg0: i32) -> (i32, i32) {
    %c0_i32 = arith.constant 0 : i32
    %c0_i32_0 = arith.constant 0 : i32
    %c0_i32_1 = arith.constant 0 : i32
    return %c0_i32, %c0_i32_0 : i32, i32
  }
  func.func @transform_4(%arg0: i32) -> (i32, i32) {
    %c0_i32 = arith.constant 0 : i32
    %c0_i32_0 = arith.constant 0 : i32
    %c0_i32_1 = arith.constant 0 : i32
    return %c0_i32, %c0_i32_0 : i32, i32
  }
  func.func @transform_5(%arg0: i32) -> (i32, i32) {
    %c0_i32 = arith.constant 0 : i32
    %c0_i32_0 = arith.constant 0 : i32
    return %arg0, %c0_i32 : i32, i32
  }
}

</mosaic_0001>

<llo_original>
// kernel: decoder_forward_padded.1
$region0: #{decoder_forward_padded.1}
  #allocation0 [shape = 'u32[]', space=smem, size = 0x4, offset = 0x4, fixed_abs, tag = 'smem constant byte address 0x4 - core index']
  #allocation1 [shape = 'u32[144,128]{1,0:T(1,128)}', space=vmem, size = 0x12000, scoped, tag = 'internal scratch']
  %s0 = inlined_call_operand.vmem [shape: bf16[16,64], index: 0, kind: input, shape index: {}]
  %s1 = inlined_call_operand.hbm [shape: bf16[64,1024], index: 1, kind: input, shape index: {}]
  %s2 = inlined_call_operand.vmem [shape: f32[1,1024], index: 2, kind: input, shape index: {}]
  %s3 = inlined_call_operand.hbm [shape: bf16[512,896], index: 3, kind: input, shape index: {}]
  %s4 = inlined_call_operand.vmem [shape: f32[1,896], index: 4, kind: input, shape index: {}]
  %s5 = inlined_call_operand.hbm [shape: f32[16,896], index: 5, kind: output, shape index: {}]
  %s6 = sld [smem:[#allocation0]]
  $region38: #{decoder_forward_padded.1} parent=0
    _
  %s8 = ssub.s32 1, %s6
  %s9 = scalar_select 0, %s8, %s6
  $region1: #{decoder_forward_padded.1} parent=0
    #allocation2 [shape = 'u8[131072]{0}', space=vmem, size = 0x20000, scoped, tag = 'input window, operand 1, single buffered']
    #allocation3 [shape = 's32[1]{0}', space=sflag, size = 0x4, scoped, tag = 'scoped memory for decoder_forward_padded.1']
    #allocation4 [shape = 's32[1]{0}', space=sflag, size = 0x4, scoped, tag = 'scoped memory for decoder_forward_padded.1']
    #allocation5 [shape = 'u8[917504]{0}', space=vmem, size = 0xe0000, scoped, tag = 'input window, operand 3, single buffered']
    #allocation6 [shape = 's32[1]{0}', space=sflag, size = 0x4, scoped, tag = 'scoped memory for decoder_forward_padded.1']
    #allocation7 [shape = 'u8[57344]{0}', space=vmem, size = 0xe000, scoped, tag = 'output window, operand 0, single buffered']
    %10 = vsyncpa [#allocation3], 0
    %11 = vsyncpa [#allocation6], 0
    %12 = vsyncpa [#allocation4], 0
    // Predicated region
    $region2: #{decoder_forward_padded.1} parent=1 // pred_check
      _
    $region3: #{decoder_forward_padded.1} parent=1 // pred_check_branch
      %14 = sbr.rel (0) target = $region5
    $region4: #{decoder_forward_padded.1} parent=1 // pred_region
      _
    $region5: #{decoder_forward_padded.1} parent=1 // pred_fallthru
      _
    // Predicated region
    $region6: #{decoder_forward_padded.1} parent=1 // pred_check
      _
    $region7: #{decoder_forward_padded.1} parent=1 // pred_check_branch
      %16 = sbr.rel (0) target = $region9
    $region8: #{decoder_forward_padded.1} parent=1 // pred_region
      %s18 = ssub.s32 4096, 4096
      %19 = vsyncadd [#allocation3], %s18
      %s20 = sshll.u32 [#allocation2], 4
      %s21 = int_to_ptr.vmem [resolvable:$true] %s20
      %26 = dma.hbm_to_vmem [thread:$0]  %s1, 4096, %s21, [#allocation3], 512, 512, 32
    $region9: #{decoder_forward_padded.1} parent=1 // pred_fallthru
      _
    // Predicated region
    $region10: #{decoder_forward_padded.1} parent=1 // pred_check
      _
    $region11: #{decoder_forward_padded.1} parent=1 // pred_check_branch
      %28 = sbr.rel (0) target = $region13
    $region12: #{decoder_forward_padded.1} parent=1 // pred_region
      _
    $region13: #{decoder_forward_padded.1} parent=1 // pred_fallthru
      _
    // Predicated region
    $region14: #{decoder_forward_padded.1} parent=1 // pred_check
      _
    $region15: #{decoder_forward_padded.1} parent=1 // pred_check_branch
      %30 = sbr.rel (0) target = $region17
    $region16: #{decoder_forward_padded.1} parent=1 // pred_region
      %s32 = ssub.s32 28672, 28672
      %33 = vsyncadd [#allocation6], %s32
      %s34 = sshll.u32 [#allocation5], 4
      %s35 = int_to_ptr.vmem [resolvable:$true] %s34
      %40 = dma.hbm_to_vmem [thread:$0]  %s3, 28672, %s35, [#allocation6], 448, 448, 28
    $region17: #{decoder_forward_padded.1} parent=1 // pred_fallthru
      _
    // Predicated region
    $region18: #{decoder_forward_padded.1} parent=1 // pred_check
      _
    $region19: #{decoder_forward_padded.1} parent=1 // pred_check_branch
      %42 = sbr.rel (0) target = $region21
    $region20: #{decoder_forward_padded.1} parent=1 // pred_region
      _
    $region21: #{decoder_forward_padded.1} parent=1 // pred_fallthru
      _
    // Predicated region
    $region22: #{decoder_forward_padded.1} parent=1 // pred_check
      _
    $region23: #{decoder_forward_padded.1} parent=1 // pred_check_branch
      %44 = sbr.rel (0) target = $region25
    $region24: #{decoder_forward_padded.1} parent=1 // pred_region
      %45 = dma.done [#allocation3], 4096
    $region25: #{decoder_forward_padded.1} parent=1 // pred_fallthru
      _
    // Predicated region
    $region26: #{decoder_forward_padded.1} parent=1 // pred_check
      _
    $region27: #{decoder_forward_padded.1} parent=1 // pred_check_branch
      %47 = sbr.rel (0) target = $region29
    $region28: #{decoder_forward_padded.1} parent=1 // pred_region
      %48 = dma.done [#allocation6], 28672
    $region29: #{decoder_forward_padded.1} parent=1 // pred_fallthru
      _
    %v50 = vld [vmem:[%s0] sm:$0xf]
    %v51 = vld [vmem:[%s0 + $0x4] sm:$0xf]
    %v52 = vld [vmem:[#allocation2] sm:$0xff]
    %v53 = vld [vmem:[#allocation2 + $0x8] sm:$0xff]
    %v54 = vld [vmem:[#allocation2 + $0x10] sm:$0xff]
    %v55 = vld [vmem:[#allocation2 + $0x18] sm:$0xff]
    %v56 = vld [vmem:[#allocation2 + $0x20] sm:$0xff]
    %v57 = vld [vmem:[#allocation2 + $0x28] sm:$0xff]
    %v58 = vld [vmem:[#allocation2 + $0x30] sm:$0xff]
    %v59 = vld [vmem:[#allocation2 + $0x38] sm:$0xff]
    %v60 = vld [vmem:[#allocation2 + $0x40] sm:$0xff]
    %v61 = vld [vmem:[#allocation2 + $0x48] sm:$0xff]
    %v62 = vld [vmem:[#allocation2 + $0x50] sm:$0xff]
    %v63 = vld [vmem:[#allocation2 + $0x58] sm:$0xff]
    %v64 = vld [vmem:[#allocation2 + $0x60] sm:$0xff]
    %v65 = vld [vmem:[#allocation2 + $0x68] sm:$0xff]
    %v66 = vld [vmem:[#allocation2 + $0x70] sm:$0xff]
    %v67 = vld [vmem:[#allocation2 + $0x78] sm:$0xff]
    %v68 = vld [vmem:[#allocation2 + $0x80] sm:$0xff]
    %v69 = vld [vmem:[#allocation2 + $0x88] sm:$0xff]
    %v70 = vld [vmem:[#allocation2 + $0x90] sm:$0xff]
    %v71 = vld [vmem:[#allocation2 + $0x98] sm:$0xff]
    %v72 = vld [vmem:[#allocation2 + $0xa0] sm:$0xff]
    %v73 = vld [vmem:[#allocation2 + $0xa8] sm:$0xff]
    %v74 = vld [vmem:[#allocation2 + $0xb0] sm:$0xff]
    %v75 = vld [vmem:[#allocation2 + $0xb8] sm:$0xff]
    %v76 = vld [vmem:[#allocation2 + $0xc0] sm:$0xff]
    %v77 = vld [vmem:[#allocation2 + $0xc8] sm:$0xff]
    %v78 = vld [vmem:[#allocation2 + $0xd0] sm:$0xff]
    %v79 = vld [vmem:[#allocation2 + $0xd8] sm:$0xff]
    %v80 = vld [vmem:[#allocation2 + $0xe0] sm:$0xff]
    %v81 = vld [vmem:[#allocation2 + $0xe8] sm:$0xff]
    %v82 = vld [vmem:[#allocation2 + $0xf0] sm:$0xff]
    %v83 = vld [vmem:[#allocation2 + $0xf8] sm:$0xff]
    %v84 = vld [vmem:[%s2] sm:$0xff]
    %v86 = vlaneseq
    %v87 = vshrl.u32 %v86, 7
    %v88 = vsub.s32 0, %v87
    %v89 = vrot.slane %v84, %v88
    %v90 = vlaneseq
    %v91 = vshrl.u32 %v90, 7
    %v92 = vsub.s32 1, %v91
    %v93 = vrot.slane %v84, %v92
    %v94 = vlaneseq
    %v95 = vshrl.u32 %v94, 7
    %v96 = vsub.s32 2, %v95
    %v97 = vrot.slane %v84, %v96
    %v98 = vlaneseq
    %v99 = vshrl.u32 %v98, 7
    %v100 = vsub.s32 3, %v99
    %v101 = vrot.slane %v84, %v100
    %v102 = vlaneseq
    %v103 = vshrl.u32 %v102, 7
    %v104 = vsub.s32 4, %v103
    %v105 = vrot.slane %v84, %v104
    %v106 = vlaneseq
    %v107 = vshrl.u32 %v106, 7
    %v108 = vsub.s32 5, %v107
    %v109 = vrot.slane %v84, %v108
    %v110 = vlaneseq
    %v111 = vshrl.u32 %v110, 7
    %v112 = vsub.s32 6, %v111
    %v113 = vrot.slane %v84, %v112
    %v114 = vlaneseq
    %v115 = vshrl.u32 %v114, 7
    %v116 = vsub.s32 7, %v115
    %v117 = vrot.slane %v84, %v116
    %v128 = vunpack.c.l.b16 %v50
    %v129 = vunpack.c.l.b16 %v51
    %v130 = vpack.c.b16 %v129, %v128
    %v163 = vunpack.c.l.b16 %v52
    %v164 = vunpack.c.h.b16 %v52
    %v165 = vunpack.c.l.b16 %v53
    %v166 = vunpack.c.h.b16 %v53
    %v167 = vunpack.c.l.b16 %v54
    %v168 = vunpack.c.h.b16 %v54
    %v169 = vunpack.c.l.b16 %v55
    %v170 = vunpack.c.h.b16 %v55
    %v171 = vunpack.c.l.b16 %v56
    %v172 = vunpack.c.h.b16 %v56
    %v173 = vunpack.c.l.b16 %v57
    %v174 = vunpack.c.h.b16 %v57
    %v175 = vunpack.c.l.b16 %v58
    %v176 = vunpack.c.h.b16 %v58
    %v177 = vunpack.c.l.b16 %v59
    %v178 = vunpack.c.h.b16 %v59
    %v179 = vunpack.c.l.b16 %v60
    %v180 = vunpack.c.h.b16 %v60
    %v181 = vunpack.c.l.b16 %v61
    %v182 = vunpack.c.h.b16 %v61
    %v183 = vunpack.c.l.b16 %v62
    %v184 = vunpack.c.h.b16 %v62
    %v185 = vunpack.c.l.b16 %v63
    %v186 = vunpack.c.h.b16 %v63
    %v187 = vunpack.c.l.b16 %v64
    %v188 = vunpack.c.h.b16 %v64
    %v189 = vunpack.c.l.b16 %v65
    %v190 = vunpack.c.h.b16 %v65
    %v191 = vunpack.c.l.b16 %v66
    %v192 = vunpack.c.h.b16 %v66
    %v193 = vunpack.c.l.b16 %v67
    %v194 = vunpack.c.h.b16 %v67
    %v195 = vunpack.c.l.b16 %v68
    %v196 = vunpack.c.h.b16 %v68
    %v197 = vunpack.c.l.b16 %v69
    %v198 = vunpack.c.h.b16 %v69
    %v199 = vunpack.c.l.b16 %v70
    %v200 = vunpack.c.h.b16 %v70
    %v201 = vunpack.c.l.b16 %v71
    %v202 = vunpack.c.h.b16 %v71
    %v203 = vunpack.c.l.b16 %v72
    %v204 = vunpack.c.h.b16 %v72
    %v205 = vunpack.c.l.b16 %v73
    %v206 = vunpack.c.h.b16 %v73
    %v207 = vunpack.c.l.b16 %v74
    %v208 = vunpack.c.h.b16 %v74
    %v209 = vunpack.c.l.b16 %v75
    %v210 = vunpack.c.h.b16 %v75
    %v211 = vunpack.c.l.b16 %v76
    %v212 = vunpack.c.h.b16 %v76
    %v213 = vunpack.c.l.b16 %v77
    %v214 = vunpack.c.h.b16 %v77
    %v215 = vunpack.c.l.b16 %v78
    %v216 = vunpack.c.h.b16 %v78
    %v217 = vunpack.c.l.b16 %v79
    %v218 = vunpack.c.h.b16 %v79
    %v219 = vunpack.c.l.b16 %v80
    %v220 = vunpack.c.h.b16 %v80
    %v221 = vunpack.c.l.b16 %v81
    %v222 = vunpack.c.h.b16 %v81
    %v223 = vunpack.c.l.b16 %v82
    %v224 = vunpack.c.h.b16 %v82
    %v225 = vunpack.c.l.b16 %v83
    %v226 = vunpack.c.h.b16 %v83
    %v227 = vpack.c.b16 %v171, %v163
    %v228 = vpack.c.b16 %v172, %v164
    %v229 = vpack.c.b16 %v173, %v165
    %v230 = vpack.c.b16 %v174, %v166
    %v231 = vpack.c.b16 %v175, %v167
    %v232 = vpack.c.b16 %v176, %v168
    %v233 = vpack.c.b16 %v177, %v169
    %v234 = vpack.c.b16 %v178, %v170
    %v235 = vpack.c.b16 %v187, %v179
    %v236 = vpack.c.b16 %v188, %v180
    %v237 = vpack.c.b16 %v189, %v181
    %v238 = vpack.c.b16 %v190, %v182
    %v239 = vpack.c.b16 %v191, %v183
    %v240 = vpack.c.b16 %v192, %v184
    %v241 = vpack.c.b16 %v193, %v185
    %v242 = vpack.c.b16 %v194, %v186
    %v243 = vpack.c.b16 %v203, %v195
    %v244 = vpack.c.b16 %v204, %v196
    %v245 = vpack.c.b16 %v205, %v197
    %v246 = vpack.c.b16 %v206, %v198
    %v247 = vpack.c.b16 %v207, %v199
    %v248 = vpack.c.b16 %v208, %v200
    %v249 = vpack.c.b16 %v209, %v201
    %v250 = vpack.c.b16 %v210, %v202
    %v251 = vpack.c.b16 %v219, %v211
    %v252 = vpack.c.b16 %v220, %v212
    %v253 = vpack.c.b16 %v221, %v213
    %v254 = vpack.c.b16 %v222, %v214
    %v255 = vpack.c.b16 %v223, %v215
    %v256 = vpack.c.b16 %v224, %v216
    %v257 = vpack.c.b16 %v225, %v217
    %v258 = vpack.c.b16 %v226, %v218
    %vm291 = vcmask 523264
    %v293 = vsel %vm291, %v130, 0
    %295 = vmatprep.subr.bf16.mxu0 0
    %296 = vmatpush1.bf16.msra.mxu0 0
    %297 = vmatprep.subr.bf16.mxu0 0
    %298 = vmatpush1.bf16.msra.mxu0 0
    %299 = vmatprep.subr.bf16.mxu0 0
    %300 = vmatpush1.bf16.msra.mxu0 0
    %301 = vmatprep.subr.bf16.mxu0 0
    %302 = vmatpush1.bf16.msra.mxu0 0
    %303 = vmatprep.subr.bf16.mxu0 %v252
    %304 = vmatpush1.bf16.msra.mxu0 %v251
    %305 = vmatprep.subr.bf16.mxu0 %v244
    %306 = vmatpush1.bf16.msra.mxu0 %v243
    %307 = vmatprep.subr.bf16.mxu0 %v236
    %308 = vmatpush1.bf16.msra.mxu0 %v235
    %309 = vmatprep.subr.bf16.mxu0 %v228
    %310 = vmatpush1.bf16.msra.mxu0 %v227
    %311 = vmatprep.subr.bf16.mxu0 0
    %312 = vmatpush2.bf16.msra.mxu0 0
    %313 = vmatprep.subr.bf16.mxu0 0
    %314 = vmatpush2.bf16.msra.mxu0 0
    %315 = vmatprep.subr.bf16.mxu0 0
    %316 = vmatpush2.bf16.msra.mxu0 0
    %317 = vmatprep.subr.bf16.mxu0 0
    %318 = vmatpush2.bf16.msra.mxu0 0
    %319 = vmatprep.subr.bf16.mxu0 0
    %320 = vmatpush2.bf16.msra.mxu0 0
    %321 = vmatprep.subr.bf16.mxu0 0
    %322 = vmatpush2.bf16.msra.mxu0 0
    %323 = vmatprep.subr.bf16.mxu0 0
    %324 = vmatpush2.bf16.msra.mxu0 0
    %325 = vmatprep.subr.bf16.mxu0 0
    %326 = vmatpush2.bf16.msra.mxu0 0
    %327 = vmatprep.mubr.bf16.mxu0 0
    %328 = vmatmul.mubr.bf16.gmra.mxu0 %v293
    %v329 = vpop.f32.mrf.mxu0
    %v330 = vadd.f32 %v89, %v329
    %v331 = vpop.f32.mrf.mxu0
    %v332 = vadd.f32 %v93, %v331
    %v333 = vpop.f32.mrf.mxu0
    %v334 = vadd.f32 %v89, %v333
    %v335 = vpop.f32.mrf.mxu0
    %v336 = vadd.f32 %v93, %v335
    %337 = vdwg.mxu0
    %338 = vmatprep.subr.bf16.mxu0 0
    %339 = vmatpush1.bf16.msra.mxu0 0
    %340 = vmatprep.subr.bf16.mxu0 0
    %341 = vmatpush1.bf16.msra.mxu0 0
    %342 = vmatprep.subr.bf16.mxu0 0
    %343 = vmatpush1.bf16.msra.mxu0 0
    %344 = vmatprep.subr.bf16.mxu0 0
    %345 = vmatpush1.bf16.msra.mxu0 0
    %346 = vmatprep.subr.bf16.mxu0 %v254
    %347 = vmatpush1.bf16.msra.mxu0 %v253
    %348 = vmatprep.subr.bf16.mxu0 %v246
    %349 = vmatpush1.bf16.msra.mxu0 %v245
    %350 = vmatprep.subr.bf16.mxu0 %v238
    %351 = vmatpush1.bf16.msra.mxu0 %v237
    %352 = vmatprep.subr.bf16.mxu0 %v230
    %353 = vmatpush1.bf16.msra.mxu0 %v229
    %354 = vmatprep.subr.bf16.mxu0 0
    %355 = vmatpush2.bf16.msra.mxu0 0
    %356 = vmatprep.subr.bf16.mxu0 0
    %357 = vmatpush2.bf16.msra.mxu0 0
    %358 = vmatprep.subr.bf16.mxu0 0
    %359 = vmatpush2.bf16.msra.mxu0 0
    %360 = vmatprep.subr.bf16.mxu0 0
    %361 = vmatpush2.bf16.msra.mxu0 0
    %362 = vmatprep.subr.bf16.mxu0 0
    %363 = vmatpush2.bf16.msra.mxu0 0
    %364 = vmatprep.subr.bf16.mxu0 0
    %365 = vmatpush2.bf16.msra.mxu0 0
    %366 = vmatprep.subr.bf16.mxu0 0
    %367 = vmatpush2.bf16.msra.mxu0 0
    %368 = vmatprep.subr.bf16.mxu0 0
    %369 = vmatpush2.bf16.msra.mxu0 0
    %370 = vmatprep.mubr.bf16.mxu0 0
    %371 = vmatmul.mubr.bf16.gmra.mxu0 %v293
    %v372 = vpop.f32.mrf.mxu0
    %v373 = vadd.f32 %v97, %v372
    %v374 = vpop.f32.mrf.mxu0
    %v375 = vadd.f32 %v101, %v374
    %v376 = vpop.f32.mrf.mxu0
    %v377 = vadd.f32 %v97, %v376
    %v378 = vpop.f32.mrf.mxu0
    %v379 = vadd.f32 %v101, %v378
    %380 = vdwg.mxu0
    %381 = vmatprep.subr.bf16.mxu0 0
    %382 = vmatpush1.bf16.msra.mxu0 0
    %383 = vmatprep.subr.bf16.mxu0 0
    %384 = vmatpush1.bf16.msra.mxu0 0
    %385 = vmatprep.subr.bf16.mxu0 0
    %386 = vmatpush1.bf16.msra.mxu0 0
    %387 = vmatprep.subr.bf16.mxu0 0
    %388 = vmatpush1.bf16.msra.mxu0 0
    %389 = vmatprep.subr.bf16.mxu0 %v256
    %390 = vmatpush1.bf16.msra.mxu0 %v255
    %391 = vmatprep.subr.bf16.mxu0 %v248
    %392 = vmatpush1.bf16.msra.mxu0 %v247
    %393 = vmatprep.subr.bf16.mxu0 %v240
    %394 = vmatpush1.bf16.msra.mxu0 %v239
    %395 = vmatprep.subr.bf16.mxu0 %v232
    %396 = vmatpush1.bf16.msra.mxu0 %v231
    %397 = vmatprep.subr.bf16.mxu0 0
    %398 = vmatpush2.bf16.msra.mxu0 0
    %399 = vmatprep.subr.bf16.mxu0 0
    %400 = vmatpush2.bf16.msra.mxu0 0
    %401 = vmatprep.subr.bf16.mxu0 0
    %402 = vmatpush2.bf16.msra.mxu0 0
    %403 = vmatprep.subr.bf16.mxu0 0
    %404 = vmatpush2.bf16.msra.mxu0 0
    %405 = vmatprep.subr.bf16.mxu0 0
    %406 = vmatpush2.bf16.msra.mxu0 0
    %407 = vmatprep.subr.bf16.mxu0 0
    %408 = vmatpush2.bf16.msra.mxu0 0
    %409 = vmatprep.subr.bf16.mxu0 0
    %410 = vmatpush2.bf16.msra.mxu0 0
    %411 = vmatprep.subr.bf16.mxu0 0
    %412 = vmatpush2.bf16.msra.mxu0 0
    %413 = vmatprep.mubr.bf16.mxu0 0
    %414 = vmatmul.mubr.bf16.gmra.mxu0 %v293
    %v415 = vpop.f32.mrf.mxu0
    %v416 = vadd.f32 %v105, %v415
    %v417 = vpop.f32.mrf.mxu0
    %v418 = vadd.f32 %v109, %v417
    %v419 = vpop.f32.mrf.mxu0
    %v420 = vadd.f32 %v105, %v419
    %v421 = vpop.f32.mrf.mxu0
    %v422 = vadd.f32 %v109, %v421
    %423 = vdwg.mxu0
    %424 = vmatprep.subr.bf16.mxu0 0
    %425 = vmatpush1.bf16.msra.mxu0 0
    %426 = vmatprep.subr.bf16.mxu0 0
    %427 = vmatpush1.bf16.msra.mxu0 0
    %428 = vmatprep.subr.bf16.mxu0 0
    %429 = vmatpush1.bf16.msra.mxu0 0
    %430 = vmatprep.subr.bf16.mxu0 0
    %431 = vmatpush1.bf16.msra.mxu0 0
    %432 = vmatprep.subr.bf16.mxu0 %v258
    %433 = vmatpush1.bf16.msra.mxu0 %v257
    %434 = vmatprep.subr.bf16.mxu0 %v250
    %435 = vmatpush1.bf16.msra.mxu0 %v249
    %436 = vmatprep.subr.bf16.mxu0 %v242
    %437 = vmatpush1.bf16.msra.mxu0 %v241
    %438 = vmatprep.subr.bf16.mxu0 %v234
    %439 = vmatpush1.bf16.msra.mxu0 %v233
    %440 = vmatprep.subr.bf16.mxu0 0
    %441 = vmatpush2.bf16.msra.mxu0 0
    %442 = vmatprep.subr.bf16.mxu0 0
    %443 = vmatpush2.bf16.msra.mxu0 0
    %444 = vmatprep.subr.bf16.mxu0 0
    %445 = vmatpush2.bf16.msra.mxu0 0
    %446 = vmatprep.subr.bf16.mxu0 0
    %447 = vmatpush2.bf16.msra.mxu0 0
    %448 = vmatprep.subr.bf16.mxu0 0
    %449 = vmatpush2.bf16.msra.mxu0 0
    %450 = vmatprep.subr.bf16.mxu0 0
    %451 = vmatpush2.bf16.msra.mxu0 0
    %452 = vmatprep.subr.bf16.mxu0 0
    %453 = vmatpush2.bf16.msra.mxu0 0
    %454 = vmatprep.subr.bf16.mxu0 0
    %455 = vmatpush2.bf16.msra.mxu0 0
    %456 = vmatprep.mubr.bf16.mxu0 0
    %457 = vmatmul.mubr.bf16.gmra.mxu0 %v293
    %v458 = vpop.f32.mrf.mxu0
    %v459 = vadd.f32 %v113, %v458
    %v460 = vpop.f32.mrf.mxu0
    %v461 = vadd.f32 %v117, %v460
    %v462 = vpop.f32.mrf.mxu0
    %v463 = vadd.f32 %v113, %v462
    %v464 = vpop.f32.mrf.mxu0
    %v465 = vadd.f32 %v117, %v464
    %466 = vdwg.mxu0
    %v467 = vxor.u32 %v330, 2147483648
    %v468 = vxor.u32 %v332, 2147483648
    %v469 = vxor.u32 %v373, 2147483648
    %v470 = vxor.u32 %v375, 2147483648
    %v471 = vxor.u32 %v334, 2147483648
    %v472 = vxor.u32 %v336, 2147483648
    %v473 = vxor.u32 %v377, 2147483648
    %v474 = vxor.u32 %v379, 2147483648
    %v475 = vmul.f32 %v467, 1.442695
    %v476 = vpow.pop %v475
    %v477 = vmul.f32 %v468, 1.442695
    %v478 = vpow.pop %v477
    %v479 = vmul.f32 %v469, 1.442695
    %v480 = vpow.pop %v479
    %v481 = vmul.f32 %v470, 1.442695
    %v482 = vpow.pop %v481
    %v483 = vmul.f32 %v471, 1.442695
    %v484 = vpow.pop %v483
    %v485 = vmul.f32 %v472, 1.442695
    %v486 = vpow.pop %v485
    %v487 = vmul.f32 %v473, 1.442695
    %v488 = vpow.pop %v487
    %v489 = vmul.f32 %v474, 1.442695
    %v490 = vpow.pop %v489
    %v491 = vadd.f32 %v476, 1.0
    %v492 = vadd.f32 %v478, 1.0
    %v493 = vadd.f32 %v480, 1.0
    %v494 = vadd.f32 %v482, 1.0
    %v495 = vadd.f32 %v484, 1.0
    %v496 = vadd.f32 %v486, 1.0
    %v497 = vadd.f32 %v488, 1.0
    %v498 = vadd.f32 %v490, 1.0
    %v499 = vrcp.pop %v491
    %v500 = vmul.f32 1.0, %v499
    %v501 = vrcp.pop %v492
    %v502 = vmul.f32 1.0, %v501
    %v503 = vrcp.pop %v493
    %v504 = vmul.f32 1.0, %v503
    %v505 = vrcp.pop %v494
    %v506 = vmul.f32 1.0, %v505
    %v507 = vrcp.pop %v495
    %v508 = vmul.f32 1.0, %v507
    %v509 = vrcp.pop %v496
    %v510 = vmul.f32 1.0, %v509
    %v511 = vrcp.pop %v497
    %v512 = vmul.f32 1.0, %v511
    %v513 = vrcp.pop %v498
    %v514 = vmul.f32 1.0, %v513
    %v515 = vmax.f32 %v416, 0.0
    %v516 = vmax.f32 %v418, 0.0
    %v517 = vmax.f32 %v459, 0.0
    %v518 = vmax.f32 %v461, 0.0
    %v519 = vmax.f32 %v420, 0.0
    %v520 = vmax.f32 %v422, 0.0
    %v521 = vmax.f32 %v463, 0.0
    %v522 = vmax.f32 %v465, 0.0
    %v523 = vmul.f32 %v500, %v515
    %v524 = vmul.f32 %v502, %v516
    %v525 = vmul.f32 %v504, %v517
    %v526 = vmul.f32 %v506, %v518
    %v527 = vmul.f32 %v508, %v519
    %v528 = vmul.f32 %v510, %v520
    %v529 = vmul.f32 %v512, %v521
    %v530 = vmul.f32 %v514, %v522
    %v531 = vpack.c.bf16 %v527, %v523
    %v532 = vpack.c.bf16 %v528, %v524
    %v533 = vpack.c.bf16 %v529, %v525
    %v534 = vpack.c.bf16 %v530, %v526
    %v535 = vld [vmem:[#allocation5] sm:$0xff]
    %v536 = vld [vmem:[#allocation5 + $0x8] sm:$0xff]
    %v537 = vld [vmem:[#allocation5 + $0x10] sm:$0xff]
    %v538 = vld [vmem:[#allocation5 + $0x18] sm:$0xf]
    %v539 = vld [vmem:[#allocation5 + $0x1c] sm:$0xff]
    %v540 = vld [vmem:[#allocation5 + $0x24] sm:$0xff]
    %v541 = vld [vmem:[#allocation5 + $0x2c] sm:$0xff]
    %v542 = vld [vmem:[#allocation5 + $0x34] sm:$0xf]
    %v543 = vld [vmem:[#allocation5 + $0x38] sm:$0xff]
    %v544 = vld [vmem:[#allocation5 + $0x40] sm:$0xff]
    %v545 = vld [vmem:[#allocation5 + $0x48] sm:$0xff]
    %v546 = vld [vmem:[#allocation5 + $0x50] sm:$0xf]
    %v547 = vld [vmem:[#allocation5 + $0x54] sm:$0xff]
    %v548 = vld [vmem:[#allocation5 + $0x5c] sm:$0xff]
    %v549 = vld [vmem:[#allocation5 + $0x64] sm:$0xff]
    %v550 = vld [vmem:[#allocation5 + $0x6c] sm:$0xf]
    %v551 = vld [vmem:[#allocation5 + $0x70] sm:$0xff]
    %v552 = vld [vmem:[#allocation5 + $0x78] sm:$0xff]
    %v553 = vld [vmem:[#allocation5 + $0x80] sm:$0xff]
    %v554 = vld [vmem:[#allocation5 + $0x88] sm:$0xf]
    %v555 = vld [vmem:[#allocation5 + $0x8c] sm:$0xff]
    %v556 = vld [vmem:[#allocation5 + $0x94] sm:$0xff]
    %v557 = vld [vmem:[#allocation5 + $0x9c] sm:$0xff]
    %v558 = vld [vmem:[#allocation5 + $0xa4] sm:$0xf]
    %v559 = vld [vmem:[#allocation5 + $0xa8] sm:$0xff]
    %v560 = vld [vmem:[#allocation5 + $0xb0] sm:$0xff]
    %v561 = vld [vmem:[#allocation5 + $0xb8] sm:$0xff]
    %v562 = vld [vmem:[#allocation5 + $0xc0] sm:$0xf]
    %v563 = vld [vmem:[#allocation5 + $0xc4] sm:$0xff]
    %v564 = vld [vmem:[#allocation5 + $0xcc] sm:$0xff]
    %v565 = vld [vmem:[#allocation5 + $0xd4] sm:$0xff]
    %v566 = vld [vmem:[#allocation5 + $0xdc] sm:$0xf]
    %v567 = vld [vmem:[#allocation5 + $0xe0] sm:$0xff]
    %v568 = vld [vmem:[#allocation5 + $0xe8] sm:$0xff]
    %v569 = vld [vmem:[#allocation5 + $0xf0] sm:$0xff]
    %v570 = vld [vmem:[#allocation5 + $0xf8] sm:$0xf]
    %v571 = vld [vmem:[#allocation5 + $0xfc] sm:$0xff]
    %v572 = vld [vmem:[#allocation5 + $0x104] sm:$0xff]
    %v573 = vld [vmem:[#allocation5 + $0x10c] sm:$0xff]
    %v574 = vld [vmem:[#allocation5 + $0x114] sm:$0xf]
    %v575 = vld [vmem:[#allocation5 + $0x118] sm:$0xff]
    %v576 = vld [vmem:[#allocation5 + $0x120] sm:$0xff]
    %v577 = vld [vmem:[#allocation5 + $0x128] sm:$0xff]
    %v578 = vld [vmem:[#allocation5 + $0x130] sm:$0xf]
    %v579 = vld [vmem:[#allocation5 + $0x134] sm:$0xff]
    %v580 = vld [vmem:[#allocation5 + $0x13c] sm:$0xff]
    %v581 = vld [vmem:[#allocation5 + $0x144] sm:$0xff]
    %v582 = vld [vmem:[#allocation5 + $0x14c] sm:$0xf]
    %v583 = vld [vmem:[#allocation5 + $0x150] sm:$0xff]
    %v584 = vld [vmem:[#allocation5 + $0x158] sm:$0xff]
    %v585 = vld [vmem:[#allocation5 + $0x160] sm:$0xff]
    %v586 = vld [vmem:[#allocation5 + $0x168] sm:$0xf]
    %v587 = vld [vmem:[#allocation5 + $0x16c] sm:$0xff]
    %v588 = vld [vmem:[#allocation5 + $0x174] sm:$0xff]
    %v589 = vld [vmem:[#allocation5 + $0x17c] sm:$0xff]
    %v590 = vld [vmem:[#allocation5 + $0x184] sm:$0xf]
    %v591 = vld [vmem:[#allocation5 + $0x188] sm:$0xff]
    %v592 = vld [vmem:[#allocation5 + $0x190] sm:$0xff]
    %v593 = vld [vmem:[#allocation5 + $0x198] sm:$0xff]
    %v594 = vld [vmem:[#allocation5 + $0x1a0] sm:$0xf]
    %v595 = vld [vmem:[#allocation5 + $0x1a4] sm:$0xff]
    %v596 = vld [vmem:[#allocation5 + $0x1ac] sm:$0xff]
    %v597 = vld [vmem:[#allocation5 + $0x1b4] sm:$0xff]
    %v598 = vld [vmem:[#allocation5 + $0x1bc] sm:$0xf]
    %v599 = vld [vmem:[#allocation5 + $0x1c0] sm:$0xff]
    %v600 = vld [vmem:[#allocation5 + $0x1c8] sm:$0xff]
    %v601 = vld [vmem:[#allocation5 + $0x1d0] sm:$0xff]
    %v602 = vld [vmem:[#allocation5 + $0x1d8] sm:$0xf]
    %v603 = vld [vmem:[#allocation5 + $0x1dc] sm:$0xff]
    %v604 = vld [vmem:[#allocation5 + $0x1e4] sm:$0xff]
    %v605 = vld [vmem:[#allocation5 + $0x1ec] sm:$0xff]
    %v606 = vld [vmem:[#allocation5 + $0x1f4] sm:$0xf]
    %v607 = vld [vmem:[#allocation5 + $0x1f8] sm:$0xff]
    %v608 = vld [vmem:[#allocation5 + $0x200] sm:$0xff]
    %v609 = vld [vmem:[#allocation5 + $0x208] sm:$0xff]
    %v610 = vld [vmem:[#allocation5 + $0x210] sm:$0xf]
    %v611 = vld [vmem:[#allocation5 + $0x214] sm:$0xff]
    %v612 = vld [vmem:[#allocation5 + $0x21c] sm:$0xff]
    %v613 = vld [vmem:[#allocation5 + $0x224] sm:$0xff]
    %v614 = vld [vmem:[#allocation5 + $0x22c] sm:$0xf]
    %v615 = vld [vmem:[#allocation5 + $0x230] sm:$0xff]
    %v616 = vld [vmem:[#allocation5 + $0x238] sm:$0xff]
    %v617 = vld [vmem:[#allocation5 + $0x240] sm:$0xff]
    %v618 = vld [vmem:[#allocation5 + $0x248] sm:$0xf]
    %v619 = vld [vmem:[#allocation5 + $0x24c] sm:$0xff]
    %v620 = vld [vmem:[#allocation5 + $0x254] sm:$0xff]
    %v621 = vld [vmem:[#allocation5 + $0x25c] sm:$0xff]
    %v622 = vld [vmem:[#allocation5 + $0x264] sm:$0xf]
    %v623 = vld [vmem:[#allocation5 + $0x268] sm:$0xff]
    %v624 = vld [vmem:[#allocation5 + $0x270] sm:$0xff]
    %v625 = vld [vmem:[#allocation5 + $0x278] sm:$0xff]
    %v626 = vld [vmem:[#allocation5 + $0x280] sm:$0xf]
    %v627 = vld [vmem:[#allocation5 + $0x284] sm:$0xff]
    %v628 = vld [vmem:[#allocation5 + $0x28c] sm:$0xff]
    %v629 = vld [vmem:[#allocation5 + $0x294] sm:$0xff]
    %v630 = vld [vmem:[#allocation5 + $0x29c] sm:$0xf]
    %v631 = vld [vmem:[#allocation5 + $0x2a0] sm:$0xff]
    %v632 = vld [vmem:[#allocation5 + $0x2a8] sm:$0xff]
    %v633 = vld [vmem:[#allocation5 + $0x2b0] sm:$0xff]
    %v634 = vld [vmem:[#allocation5 + $0x2b8] sm:$0xf]
    %v635 = vld [vmem:[#allocation5 + $0x2bc] sm:$0xff]
    %v636 = vld [vmem:[#allocation5 + $0x2c4] sm:$0xff]
    %v637 = vld [vmem:[#allocation5 + $0x2cc] sm:$0xff]
    %v638 = vld [vmem:[#allocation5 + $0x2d4] sm:$0xf]
    %v639 = vld [vmem:[#allocation5 + $0x2d8] sm:$0xff]
    %v640 = vld [vmem:[#allocation5 + $0x2e0] sm:$0xff]
    %v641 = vld [vmem:[#allocation5 + $0x2e8] sm:$0xff]
    %v642 = vld [vmem:[#allocation5 + $0x2f0] sm:$0xf]
    %v643 = vld [vmem:[#allocation5 + $0x2f4] sm:$0xff]
    %v644 = vld [vmem:[#allocation5 + $0x2fc] sm:$0xff]
    %v645 = vld [vmem:[#allocation5 + $0x304] sm:$0xff]
    %v646 = vld [vmem:[#allocation5 + $0x30c] sm:$0xf]
    %v647 = vld [vmem:[#allocation5 + $0x310] sm:$0xff]
    %v648 = vld [vmem:[#allocation5 + $0x318] sm:$0xff]
    %v649 = vld [vmem:[#allocation5 + $0x320] sm:$0xff]
    %v650 = vld [vmem:[#allocation5 + $0x328] sm:$0xf]
    %v651 = vld [vmem:[#allocation5 + $0x32c] sm:$0xff]
    %v652 = vld [vmem:[#allocation5 + $0x334] sm:$0xff]
    %v653 = vld [vmem:[#allocation5 + $0x33c] sm:$0xff]
    %v654 = vld [vmem:[#allocation5 + $0x344] sm:$0xf]
    %v655 = vld [vmem:[#allocation5 + $0x348] sm:$0xff]
    %v656 = vld [vmem:[#allocation5 + $0x350] sm:$0xff]
    %v657 = vld [vmem:[#allocation5 + $0x358] sm:$0xff]
    %v658 = vld [vmem:[#allocation5 + $0x360] sm:$0xf]
    %v659 = vld [vmem:[#allocation5 + $0x364] sm:$0xff]
    %v660 = vld [vmem:[#allocation5 + $0x36c] sm:$0xff]
    %v661 = vld [vmem:[#allocation5 + $0x374] sm:$0xff]
    %v662 = vld [vmem:[#allocation5 + $0x37c] sm:$0xf]
    %v663 = vld [vmem:[#allocation5 + $0x380] sm:$0xff]
    %v664 = vld [vmem:[#allocation5 + $0x388] sm:$0xff]
    %v665 = vld [vmem:[#allocation5 + $0x390] sm:$0xff]
    %v666 = vld [vmem:[#allocation5 + $0x398] sm:$0xf]
    %v667 = vld [vmem:[#allocation5 + $0x39c] sm:$0xff]
    %v668 = vld [vmem:[#allocation5 + $0x3a4] sm:$0xff]
    %v669 = vld [vmem:[#allocation5 + $0x3ac] sm:$0xff]
    %v670 = vld [vmem:[#allocation5 + $0x3b4] sm:$0xf]
    %v671 = vld [vmem:[#allocation5 + $0x3b8] sm:$0xff]
    %v672 = vld [vmem:[#allocation5 + $0x3c0] sm:$0xff]
    %v673 = vld [vmem:[#allocation5 + $0x3c8] sm:$0xff]
    %v674 = vld [vmem:[#allocation5 + $0x3d0] sm:$0xf]
    %v675 = vld [vmem:[#allocation5 + $0x3d4] sm:$0xff]
    %v676 = vld [vmem:[#allocation5 + $0x3dc] sm:$0xff]
    %v677 = vld [vmem:[#allocation5 + $0x3e4] sm:$0xff]
    %v678 = vld [vmem:[#allocation5 + $0x3ec] sm:$0xf]
    %v679 = vld [vmem:[#allocation5 + $0x3f0] sm:$0xff]
    %v680 = vld [vmem:[#allocation5 + $0x3f8] sm:$0xff]
    %v681 = vld [vmem:[#allocation5 + $0x400] sm:$0xff]
    %v682 = vld [vmem:[#allocation5 + $0x408] sm:$0xf]
    %v683 = vld [vmem:[#allocation5 + $0x40c] sm:$0xff]
    %v684 = vld [vmem:[#allocation5 + $0x414] sm:$0xff]
    %v685 = vld [vmem:[#allocation5 + $0x41c] sm:$0xff]
    %v686 = vld [vmem:[#allocation5 + $0x424] sm:$0xf]
    %v687 = vld [vmem:[#allocation5 + $0x428] sm:$0xff]
    %v688 = vld [vmem:[#allocation5 + $0x430] sm:$0xff]
    %v689 = vld [vmem:[#allocation5 + $0x438] sm:$0xff]
    %v690 = vld [vmem:[#allocation5 + $0x440] sm:$0xf]
    %v691 = vld [vmem:[#allocation5 + $0x444] sm:$0xff]
    %v692 = vld [vmem:[#allocation5 + $0x44c] sm:$0xff]
    %v693 = vld [vmem:[#allocation5 + $0x454] sm:$0xff]
    %v694 = vld [vmem:[#allocation5 + $0x45c] sm:$0xf]
    %v695 = vld [vmem:[#allocation5 + $0x460] sm:$0xff]
    %v696 = vld [vmem:[#allocation5 + $0x468] sm:$0xff]
    %v697 = vld [vmem:[#allocation5 + $0x470] sm:$0xff]
    %v698 = vld [vmem:[#allocation5 + $0x478] sm:$0xf]
    %v699 = vld [vmem:[#allocation5 + $0x47c] sm:$0xff]
    %v700 = vld [vmem:[#allocation5 + $0x484] sm:$0xff]
    %v701 = vld [vmem:[#allocation5 + $0x48c] sm:$0xff]
    %v702 = vld [vmem:[#allocation5 + $0x494] sm:$0xf]
    %v703 = vld [vmem:[#allocation5 + $0x498] sm:$0xff]
    %v704 = vld [vmem:[#allocation5 + $0x4a0] sm:$0xff]
    %v705 = vld [vmem:[#allocation5 + $0x4a8] sm:$0xff]
    %v706 = vld [vmem:[#allocation5 + $0x4b0] sm:$0xf]
    %v707 = vld [vmem:[#allocation5 + $0x4b4] sm:$0xff]
    %v708 = vld [vmem:[#allocation5 + $0x4bc] sm:$0xff]
    %v709 = vld [vmem:[#allocation5 + $0x4c4] sm:$0xff]
    %v710 = vld [vmem:[#allocation5 + $0x4cc] sm:$0xf]
    %v711 = vld [vmem:[#allocation5 + $0x4d0] sm:$0xff]
    %v712 = vld [vmem:[#allocation5 + $0x4d8] sm:$0xff]
    %v713 = vld [vmem:[#allocation5 + $0x4e0] sm:$0xff]
    %v714 = vld [vmem:[#allocation5 + $0x4e8] sm:$0xf]
    %v715 = vld [vmem:[#allocation5 + $0x4ec] sm:$0xff]
    %v716 = vld [vmem:[#allocation5 + $0x4f4] sm:$0xff]
    %v717 = vld [vmem:[#allocation5 + $0x4fc] sm:$0xff]
    %v718 = vld [vmem:[#allocation5 + $0x504] sm:$0xf]
    %v719 = vld [vmem:[#allocation5 + $0x508] sm:$0xff]
    %v720 = vld [vmem:[#allocation5 + $0x510] sm:$0xff]
    %v721 = vld [vmem:[#allocation5 + $0x518] sm:$0xff]
    %v722 = vld [vmem:[#allocation5 + $0x520] sm:$0xf]
    %v723 = vld [vmem:[#allocation5 + $0x524] sm:$0xff]
    %v724 = vld [vmem:[#allocation5 + $0x52c] sm:$0xff]
    %v725 = vld [vmem:[#allocation5 + $0x534] sm:$0xff]
    %v726 = vld [vmem:[#allocation5 + $0x53c] sm:$0xf]
    %v727 = vld [vmem:[#allocation5 + $0x540] sm:$0xff]
    %v728 = vld [vmem:[#allocation5 + $0x548] sm:$0xff]
    %v729 = vld [vmem:[#allocation5 + $0x550] sm:$0xff]
    %v730 = vld [vmem:[#allocation5 + $0x558] sm:$0xf]
    %v731 = vld [vmem:[#allocation5 + $0x55c] sm:$0xff]
    %v732 = vld [vmem:[#allocation5 + $0x564] sm:$0xff]
    %v733 = vld [vmem:[#allocation5 + $0x56c] sm:$0xff]
    %v734 = vld [vmem:[#allocation5 + $0x574] sm:$0xf]
    %v735 = vld [vmem:[#allocation5 + $0x578] sm:$0xff]
    %v736 = vld [vmem:[#allocation5 + $0x580] sm:$0xff]
    %v737 = vld [vmem:[#allocation5 + $0x588] sm:$0xff]
    %v738 = vld [vmem:[#allocation5 + $0x590] sm:$0xf]
    %v739 = vld [vmem:[#allocation5 + $0x594] sm:$0xff]
    %v740 = vld [vmem:[#allocation5 + $0x59c] sm:$0xff]
    %v741 = vld [vmem:[#allocation5 + $0x5a4] sm:$0xff]
    %v742 = vld [vmem:[#allocation5 + $0x5ac] sm:$0xf]
    %v743 = vld [vmem:[#allocation5 + $0x5b0] sm:$0xff]
    %v744 = vld [vmem:[#allocation5 + $0x5b8] sm:$0xff]
    %v745 = vld [vmem:[#allocation5 + $0x5c0] sm:$0xff]
    %v746 = vld [vmem:[#allocation5 + $0x5c8] sm:$0xf]
    %v747 = vld [vmem:[#allocation5 + $0x5cc] sm:$0xff]
    %v748 = vld [vmem:[#allocation5 + $0x5d4] sm:$0xff]
    %v749 = vld [vmem:[#allocation5 + $0x5dc] sm:$0xff]
    %v750 = vld [vmem:[#allocation5 + $0x5e4] sm:$0xf]
    %v751 = vld [vmem:[#allocation5 + $0x5e8] sm:$0xff]
    %v752 = vld [vmem:[#allocation5 + $0x5f0] sm:$0xff]
    %v753 = vld [vmem:[#allocation5 + $0x5f8] sm:$0xff]
    %v754 = vld [vmem:[#allocation5 + $0x600] sm:$0xf]
    %v755 = vld [vmem:[#allocation5 + $0x604] sm:$0xff]
    %v756 = vld [vmem:[#allocation5 + $0x60c] sm:$0xff]
    %v757 = vld [vmem:[#allocation5 + $0x614] sm:$0xff]
    %v758 = vld [vmem:[#allocation5 + $0x61c] sm:$0xf]
    %v759 = vld [vmem:[#allocation5 + $0x620] sm:$0xff]
    %v760 = vld [vmem:[#allocation5 + $0x628] sm:$0xff]
    %v761 = vld [vmem:[#allocation5 + $0x630] sm:$0xff]
    %v762 = vld [vmem:[#allocation5 + $0x638] sm:$0xf]
    %v763 = vld [vmem:[#allocation5 + $0x63c] sm:$0xff]
    %v764 = vld [vmem:[#allocation5 + $0x644] sm:$0xff]
    %v765 = vld [vmem:[#allocation5 + $0x64c] sm:$0xff]
    %v766 = vld [vmem:[#allocation5 + $0x654] sm:$0xf]
    %v767 = vld [vmem:[#allocation5 + $0x658] sm:$0xff]
    %v768 = vld [vmem:[#allocation5 + $0x660] sm:$0xff]
    %v769 = vld [vmem:[#allocation5 + $0x668] sm:$0xff]
    %v770 = vld [vmem:[#allocation5 + $0x670] sm:$0xf]
    %v771 = vld [vmem:[#allocation5 + $0x674] sm:$0xff]
    %v772 = vld [vmem:[#allocation5 + $0x67c] sm:$0xff]
    %v773 = vld [vmem:[#allocation5 + $0x684] sm:$0xff]
    %v774 = vld [vmem:[#allocation5 + $0x68c] sm:$0xf]
    %v775 = vld [vmem:[#allocation5 + $0x690] sm:$0xff]
    %v776 = vld [vmem:[#allocation5 + $0x698] sm:$0xff]
    %v777 = vld [vmem:[#allocation5 + $0x6a0] sm:$0xff]
    %v778 = vld [vmem:[#allocation5 + $0x6a8] sm:$0xf]
    %v779 = vld [vmem:[#allocation5 + $0x6ac] sm:$0xff]
    %v780 = vld [vmem:[#allocation5 + $0x6b4] sm:$0xff]
    %v781 = vld [vmem:[#allocation5 + $0x6bc] sm:$0xff]
    %v782 = vld [vmem:[#allocation5 + $0x6c4] sm:$0xf]
    %v783 = vld [vmem:[#allocation5 + $0x6c8] sm:$0xff]
    %v784 = vld [vmem:[#allocation5 + $0x6d0] sm:$0xff]
    %v785 = vld [vmem:[#allocation5 + $0x6d8] sm:$0xff]
    %v786 = vld [vmem:[#allocation5 + $0x6e0] sm:$0xf]
    %v787 = vld [vmem:[#allocation5 + $0x6e4] sm:$0xff]
    %v788 = vld [vmem:[#allocation5 + $0x6ec] sm:$0xff]
    %v789 = vld [vmem:[#allocation5 + $0x6f4] sm:$0xff]
    %v790 = vld [vmem:[#allocation5 + $0x6fc] sm:$0xf]
    %v791 = vld [vmem:[%s4] sm:$0xff]
    %v793 = vlaneseq
    %v794 = vshrl.u32 %v793, 7
    %v795 = vsub.s32 0, %v794
    %v796 = vrot.slane %v791, %v795
    %v797 = vlaneseq
    %v798 = vshrl.u32 %v797, 7
    %v799 = vsub.s32 1, %v798
    %v800 = vrot.slane %v791, %v799
    %v801 = vlaneseq
    %v802 = vshrl.u32 %v801, 7
    %v803 = vsub.s32 2, %v802
    %v804 = vrot.slane %v791, %v803
    %v805 = vlaneseq
    %v806 = vshrl.u32 %v805, 7
    %v807 = vsub.s32 3, %v806
    %v808 = vrot.slane %v791, %v807
    %v809 = vlaneseq
    %v810 = vshrl.u32 %v809, 7
    %v811 = vsub.s32 4, %v810
    %v812 = vrot.slane %v791, %v811
    %v813 = vlaneseq
    %v814 = vshrl.u32 %v813, 7
    %v815 = vsub.s32 5, %v814
    %v816 = vrot.slane %v791, %v815
    %v817 = vlaneseq
    %v818 = vshrl.u32 %v817, 7
    %v819 = vsub.s32 6, %v818
    %v820 = vrot.slane %v791, %v819
    %v1084 = vunpack.c.l.b16 %v535
    %v1085 = vunpack.c.h.b16 %v535
    %v1086 = vunpack.c.l.b16 %v536
    %v1087 = vunpack.c.h.b16 %v536
    %v1088 = vunpack.c.l.b16 %v537
    %v1089 = vunpack.c.h.b16 %v537
    %v1090 = vunpack.c.l.b16 %v538
    %v1091 = vunpack.c.l.b16 %v539
    %v1092 = vunpack.c.h.b16 %v539
    %v1093 = vunpack.c.l.b16 %v540
    %v1094 = vunpack.c.h.b16 %v540
    %v1095 = vunpack.c.l.b16 %v541
    %v1096 = vunpack.c.h.b16 %v541
    %v1097 = vunpack.c.l.b16 %v542
    %v1098 = vunpack.c.l.b16 %v543
    %v1099 = vunpack.c.h.b16 %v543
    %v1100 = vunpack.c.l.b16 %v544
    %v1101 = vunpack.c.h.b16 %v544
    %v1102 = vunpack.c.l.b16 %v545
    %v1103 = vunpack.c.h.b16 %v545
    %v1104 = vunpack.c.l.b16 %v546
    %v1105 = vunpack.c.l.b16 %v547
    %v1106 = vunpack.c.h.b16 %v547
    %v1107 = vunpack.c.l.b16 %v548
    %v1108 = vunpack.c.h.b16 %v548
    %v1109 = vunpack.c.l.b16 %v549
    %v1110 = vunpack.c.h.b16 %v549
    %v1111 = vunpack.c.l.b16 %v550
    %v1112 = vunpack.c.l.b16 %v551
    %v1113 = vunpack.c.h.b16 %v551
    %v1114 = vunpack.c.l.b16 %v552
    %v1115 = vunpack.c.h.b16 %v552
    %v1116 = vunpack.c.l.b16 %v553
    %v1117 = vunpack.c.h.b16 %v553
    %v1118 = vunpack.c.l.b16 %v554
    %v1119 = vunpack.c.l.b16 %v555
    %v1120 = vunpack.c.h.b16 %v555
    %v1121 = vunpack.c.l.b16 %v556
    %v1122 = vunpack.c.h.b16 %v556
    %v1123 = vunpack.c.l.b16 %v557
    %v1124 = vunpack.c.h.b16 %v557
    %v1125 = vunpack.c.l.b16 %v558
    %v1126 = vunpack.c.l.b16 %v559
    %v1127 = vunpack.c.h.b16 %v559
    %v1128 = vunpack.c.l.b16 %v560
    %v1129 = vunpack.c.h.b16 %v560
    %v1130 = vunpack.c.l.b16 %v561
    %v1131 = vunpack.c.h.b16 %v561
    %v1132 = vunpack.c.l.b16 %v562
    %v1133 = vunpack.c.l.b16 %v563
    %v1134 = vunpack.c.h.b16 %v563
    %v1135 = vunpack.c.l.b16 %v564
    %v1136 = vunpack.c.h.b16 %v564
    %v1137 = vunpack.c.l.b16 %v565
    %v1138 = vunpack.c.h.b16 %v565
    %v1139 = vunpack.c.l.b16 %v566
    %v1140 = vunpack.c.l.b16 %v567
    %v1141 = vunpack.c.h.b16 %v567
    %v1142 = vunpack.c.l.b16 %v568
    %v1143 = vunpack.c.h.b16 %v568
    %v1144 = vunpack.c.l.b16 %v569
    %v1145 = vunpack.c.h.b16 %v569
    %v1146 = vunpack.c.l.b16 %v570
    %v1147 = vunpack.c.l.b16 %v571
    %v1148 = vunpack.c.h.b16 %v571
    %v1149 = vunpack.c.l.b16 %v572
    %v1150 = vunpack.c.h.b16 %v572
    %v1151 = vunpack.c.l.b16 %v573
    %v1152 = vunpack.c.h.b16 %v573
    %v1153 = vunpack.c.l.b16 %v574
    %v1154 = vunpack.c.l.b16 %v575
    %v1155 = vunpack.c.h.b16 %v575
    %v1156 = vunpack.c.l.b16 %v576
    %v1157 = vunpack.c.h.b16 %v576
    %v1158 = vunpack.c.l.b16 %v577
    %v1159 = vunpack.c.h.b16 %v577
    %v1160 = vunpack.c.l.b16 %v578
    %v1161 = vunpack.c.l.b16 %v579
    %v1162 = vunpack.c.h.b16 %v579
    %v1163 = vunpack.c.l.b16 %v580
    %v1164 = vunpack.c.h.b16 %v580
    %v1165 = vunpack.c.l.b16 %v581
    %v1166 = vunpack.c.h.b16 %v581
    %v1167 = vunpack.c.l.b16 %v582
    %v1168 = vunpack.c.l.b16 %v583
    %v1169 = vunpack.c.h.b16 %v583
    %v1170 = vunpack.c.l.b16 %v584
    %v1171 = vunpack.c.h.b16 %v584
    %v1172 = vunpack.c.l.b16 %v585
    %v1173 = vunpack.c.h.b16 %v585
    %v1174 = vunpack.c.l.b16 %v586
    %v1175 = vunpack.c.l.b16 %v587
    %v1176 = vunpack.c.h.b16 %v587
    %v1177 = vunpack.c.l.b16 %v588
    %v1178 = vunpack.c.h.b16 %v588
    %v1179 = vunpack.c.l.b16 %v589
    %v1180 = vunpack.c.h.b16 %v589
    %v1181 = vunpack.c.l.b16 %v590
    %v1182 = vunpack.c.l.b16 %v591
    %v1183 = vunpack.c.h.b16 %v591
    %v1184 = vunpack.c.l.b16 %v592
    %v1185 = vunpack.c.h.b16 %v592
    %v1186 = vunpack.c.l.b16 %v593
    %v1187 = vunpack.c.h.b16 %v593
    %v1188 = vunpack.c.l.b16 %v594
    %v1189 = vunpack.c.l.b16 %v595
    %v1190 = vunpack.c.h.b16 %v595
    %v1191 = vunpack.c.l.b16 %v596
    %v1192 = vunpack.c.h.b16 %v596
    %v1193 = vunpack.c.l.b16 %v597
    %v1194 = vunpack.c.h.b16 %v597
    %v1195 = vunpack.c.l.b16 %v598
    %v1196 = vunpack.c.l.b16 %v599
    %v1197 = vunpack.c.h.b16 %v599
    %v1198 = vunpack.c.l.b16 %v600
    %v1199 = vunpack.c.h.b16 %v600
    %v1200 = vunpack.c.l.b16 %v601
    %v1201 = vunpack.c.h.b16 %v601
    %v1202 = vunpack.c.l.b16 %v602
    %v1203 = vunpack.c.l.b16 %v603
    %v1204 = vunpack.c.h.b16 %v603
    %v1205 = vunpack.c.l.b16 %v604
    %v1206 = vunpack.c.h.b16 %v604
    %v1207 = vunpack.c.l.b16 %v605
    %v1208 = vunpack.c.h.b16 %v605
    %v1209 = vunpack.c.l.b16 %v606
    %v1210 = vunpack.c.l.b16 %v607
    %v1211 = vunpack.c.h.b16 %v607
    %v1212 = vunpack.c.l.b16 %v608
    %v1213 = vunpack.c.h.b16 %v608
    %v1214 = vunpack.c.l.b16 %v609
    %v1215 = vunpack.c.h.b16 %v609
    %v1216 = vunpack.c.l.b16 %v610
    %v1217 = vunpack.c.l.b16 %v611
    %v1218 = vunpack.c.h.b16 %v611
    %v1219 = vunpack.c.l.b16 %v612
    %v1220 = vunpack.c.h.b16 %v612
    %v1221 = vunpack.c.l.b16 %v613
    %v1222 = vunpack.c.h.b16 %v613
    %v1223 = vunpack.c.l.b16 %v614
    %v1224 = vunpack.c.l.b16 %v615
    %v1225 = vunpack.c.h.b16 %v615
    %v1226 = vunpack.c.l.b16 %v616
    %v1227 = vunpack.c.h.b16 %v616
    %v1228 = vunpack.c.l.b16 %v617
    %v1229 = vunpack.c.h.b16 %v617
    %v1230 = vunpack.c.l.b16 %v618
    %v1231 = vunpack.c.l.b16 %v619
    %v1232 = vunpack.c.h.b16 %v619
    %v1233 = vunpack.c.l.b16 %v620
    %v1234 = vunpack.c.h.b16 %v620
    %v1235 = vunpack.c.l.b16 %v621
    %v1236 = vunpack.c.h.b16 %v621
    %v1237 = vunpack.c.l.b16 %v622
    %v1238 = vunpack.c.l.b16 %v623
    %v1239 = vunpack.c.h.b16 %v623
    %v1240 = vunpack.c.l.b16 %v624
    %v1241 = vunpack.c.h.b16 %v624
    %v1242 = vunpack.c.l.b16 %v625
    %v1243 = vunpack.c.h.b16 %v625
    %v1244 = vunpack.c.l.b16 %v626
    %v1245 = vunpack.c.l.b16 %v627
    %v1246 = vunpack.c.h.b16 %v627
    %v1247 = vunpack.c.l.b16 %v628
    %v1248 = vunpack.c.h.b16 %v628
    %v1249 = vunpack.c.l.b16 %v629
    %v1250 = vunpack.c.h.b16 %v629
    %v1251 = vunpack.c.l.b16 %v630
    %v1252 = vunpack.c.l.b16 %v631
    %v1253 = vunpack.c.h.b16 %v631
    %v1254 = vunpack.c.l.b16 %v632
    %v1255 = vunpack.c.h.b16 %v632
    %v1256 = vunpack.c.l.b16 %v633
    %v1257 = vunpack.c.h.b16 %v633
    %v1258 = vunpack.c.l.b16 %v634
    %v1259 = vunpack.c.l.b16 %v635
    %v1260 = vunpack.c.h.b16 %v635
    %v1261 = vunpack.c.l.b16 %v636
    %v1262 = vunpack.c.h.b16 %v636
    %v1263 = vunpack.c.l.b16 %v637
    %v1264 = vunpack.c.h.b16 %v637
    %v1265 = vunpack.c.l.b16 %v638
    %v1266 = vunpack.c.l.b16 %v639
    %v1267 = vunpack.c.h.b16 %v639
    %v1268 = vunpack.c.l.b16 %v640
    %v1269 = vunpack.c.h.b16 %v640
    %v1270 = vunpack.c.l.b16 %v641
    %v1271 = vunpack.c.h.b16 %v641
    %v1272 = vunpack.c.l.b16 %v642
    %v1273 = vunpack.c.l.b16 %v643
    %v1274 = vunpack.c.h.b16 %v643
    %v1275 = vunpack.c.l.b16 %v644
    %v1276 = vunpack.c.h.b16 %v644
    %v1277 = vunpack.c.l.b16 %v645
    %v1278 = vunpack.c.h.b16 %v645
    %v1279 = vunpack.c.l.b16 %v646
    %v1280 = vunpack.c.l.b16 %v647
    %v1281 = vunpack.c.h.b16 %v647
    %v1282 = vunpack.c.l.b16 %v648
    %v1283 = vunpack.c.h.b16 %v648
    %v1284 = vunpack.c.l.b16 %v649
    %v1285 = vunpack.c.h.b16 %v649
    %v1286 = vunpack.c.l.b16 %v650
    %v1287 = vunpack.c.l.b16 %v651
    %v1288 = vunpack.c.h.b16 %v651
    %v1289 = vunpack.c.l.b16 %v652
    %v1290 = vunpack.c.h.b16 %v652
    %v1291 = vunpack.c.l.b16 %v653
    %v1292 = vunpack.c.h.b16 %v653
    %v1293 = vunpack.c.l.b16 %v654
    %v1294 = vunpack.c.l.b16 %v655
    %v1295 = vunpack.c.h.b16 %v655
    %v1296 = vunpack.c.l.b16 %v656
    %v1297 = vunpack.c.h.b16 %v656
    %v1298 = vunpack.c.l.b16 %v657
    %v1299 = vunpack.c.h.b16 %v657
    %v1300 = vunpack.c.l.b16 %v658
    %v1301 = vunpack.c.l.b16 %v659
    %v1302 = vunpack.c.h.b16 %v659
    %v1303 = vunpack.c.l.b16 %v660
    %v1304 = vunpack.c.h.b16 %v660
    %v1305 = vunpack.c.l.b16 %v661
    %v1306 = vunpack.c.h.b16 %v661
    %v1307 = vunpack.c.l.b16 %v662
    %v1308 = vunpack.c.l.b16 %v663
    %v1309 = vunpack.c.h.b16 %v663
    %v1310 = vunpack.c.l.b16 %v664
    %v1311 = vunpack.c.h.b16 %v664
    %v1312 = vunpack.c.l.b16 %v665
    %v1313 = vunpack.c.h.b16 %v665
    %v1314 = vunpack.c.l.b16 %v666
    %v1315 = vunpack.c.l.b16 %v667
    %v1316 = vunpack.c.h.b16 %v667
    %v1317 = vunpack.c.l.b16 %v668
    %v1318 = vunpack.c.h.b16 %v668
    %v1319 = vunpack.c.l.b16 %v669
    %v1320 = vunpack.c.h.b16 %v669
    %v1321 = vunpack.c.l.b16 %v670
    %v1322 = vunpack.c.l.b16 %v671
    %v1323 = vunpack.c.h.b16 %v671
    %v1324 = vunpack.c.l.b16 %v672
    %v1325 = vunpack.c.h.b16 %v672
    %v1326 = vunpack.c.l.b16 %v673
    %v1327 = vunpack.c.h.b16 %v673
    %v1328 = vunpack.c.l.b16 %v674
    %v1329 = vunpack.c.l.b16 %v675
    %v1330 = vunpack.c.h.b16 %v675
    %v1331 = vunpack.c.l.b16 %v676
    %v1332 = vunpack.c.h.b16 %v676
    %v1333 = vunpack.c.l.b16 %v677
    %v1334 = vunpack.c.h.b16 %v677
    %v1335 = vunpack.c.l.b16 %v678
    %v1336 = vunpack.c.l.b16 %v679
    %v1337 = vunpack.c.h.b16 %v679
    %v1338 = vunpack.c.l.b16 %v680
    %v1339 = vunpack.c.h.b16 %v680
    %v1340 = vunpack.c.l.b16 %v681
    %v1341 = vunpack.c.h.b16 %v681
    %v1342 = vunpack.c.l.b16 %v682
    %v1343 = vunpack.c.l.b16 %v683
    %v1344 = vunpack.c.h.b16 %v683
    %v1345 = vunpack.c.l.b16 %v684
    %v1346 = vunpack.c.h.b16 %v684
    %v1347 = vunpack.c.l.b16 %v685
    %v1348 = vunpack.c.h.b16 %v685
    %v1349 = vunpack.c.l.b16 %v686
    %v1350 = vunpack.c.l.b16 %v687
    %v1351 = vunpack.c.h.b16 %v687
    %v1352 = vunpack.c.l.b16 %v688
    %v1353 = vunpack.c.h.b16 %v688
    %v1354 = vunpack.c.l.b16 %v689
    %v1355 = vunpack.c.h.b16 %v689
    %v1356 = vunpack.c.l.b16 %v690
    %v1357 = vunpack.c.l.b16 %v691
    %v1358 = vunpack.c.h.b16 %v691
    %v1359 = vunpack.c.l.b16 %v692
    %v1360 = vunpack.c.h.b16 %v692
    %v1361 = vunpack.c.l.b16 %v693
    %v1362 = vunpack.c.h.b16 %v693
    %v1363 = vunpack.c.l.b16 %v694
    %v1364 = vunpack.c.l.b16 %v695
    %v1365 = vunpack.c.h.b16 %v695
    %v1366 = vunpack.c.l.b16 %v696
    %v1367 = vunpack.c.h.b16 %v696
    %v1368 = vunpack.c.l.b16 %v697
    %v1369 = vunpack.c.h.b16 %v697
    %v1370 = vunpack.c.l.b16 %v698
    %v1371 = vunpack.c.l.b16 %v699
    %v1372 = vunpack.c.h.b16 %v699
    %v1373 = vunpack.c.l.b16 %v700
    %v1374 = vunpack.c.h.b16 %v700
    %v1375 = vunpack.c.l.b16 %v701
    %v1376 = vunpack.c.h.b16 %v701
    %v1377 = vunpack.c.l.b16 %v702
    %v1378 = vunpack.c.l.b16 %v703
    %v1379 = vunpack.c.h.b16 %v703
    %v1380 = vunpack.c.l.b16 %v704
    %v1381 = vunpack.c.h.b16 %v704
    %v1382 = vunpack.c.l.b16 %v705
    %v1383 = vunpack.c.h.b16 %v705
    %v1384 = vunpack.c.l.b16 %v706
    %v1385 = vunpack.c.l.b16 %v707
    %v1386 = vunpack.c.h.b16 %v707
    %v1387 = vunpack.c.l.b16 %v708
    %v1388 = vunpack.c.h.b16 %v708
    %v1389 = vunpack.c.l.b16 %v709
    %v1390 = vunpack.c.h.b16 %v709
    %v1391 = vunpack.c.l.b16 %v710
    %v1392 = vunpack.c.l.b16 %v711
    %v1393 = vunpack.c.h.b16 %v711
    %v1394 = vunpack.c.l.b16 %v712
    %v1395 = vunpack.c.h.b16 %v712
    %v1396 = vunpack.c.l.b16 %v713
    %v1397 = vunpack.c.h.b16 %v713
    %v1398 = vunpack.c.l.b16 %v714
    %v1399 = vunpack.c.l.b16 %v715
    %v1400 = vunpack.c.h.b16 %v715
    %v1401 = vunpack.c.l.b16 %v716
    %v1402 = vunpack.c.h.b16 %v716
    %v1403 = vunpack.c.l.b16 %v717
    %v1404 = vunpack.c.h.b16 %v717
    %v1405 = vunpack.c.l.b16 %v718
    %v1406 = vunpack.c.l.b16 %v719
    %v1407 = vunpack.c.h.b16 %v719
    %v1408 = vunpack.c.l.b16 %v720
    %v1409 = vunpack.c.h.b16 %v720
    %v1410 = vunpack.c.l.b16 %v721
    %v1411 = vunpack.c.h.b16 %v721
    %v1412 = vunpack.c.l.b16 %v722
    %v1413 = vunpack.c.l.b16 %v723
    %v1414 = vunpack.c.h.b16 %v723
    %v1415 = vunpack.c.l.b16 %v724
    %v1416 = vunpack.c.h.b16 %v724
    %v1417 = vunpack.c.l.b16 %v725
    %v1418 = vunpack.c.h.b16 %v725
    %v1419 = vunpack.c.l.b16 %v726
    %v1420 = vunpack.c.l.b16 %v727
    %v1421 = vunpack.c.h.b16 %v727
    %v1422 = vunpack.c.l.b16 %v728
    %v1423 = vunpack.c.h.b16 %v728
    %v1424 = vunpack.c.l.b16 %v729
    %v1425 = vunpack.c.h.b16 %v729
    %v1426 = vunpack.c.l.b16 %v730
    %v1427 = vunpack.c.l.b16 %v731
    %v1428 = vunpack.c.h.b16 %v731
    %v1429 = vunpack.c.l.b16 %v732
    %v1430 = vunpack.c.h.b16 %v732
    %v1431 = vunpack.c.l.b16 %v733
    %v1432 = vunpack.c.h.b16 %v733
    %v1433 = vunpack.c.l.b16 %v734
    %v1434 = vunpack.c.l.b16 %v735
    %v1435 = vunpack.c.h.b16 %v735
    %v1436 = vunpack.c.l.b16 %v736
    %v1437 = vunpack.c.h.b16 %v736
    %v1438 = vunpack.c.l.b16 %v737
    %v1439 = vunpack.c.h.b16 %v737
    %v1440 = vunpack.c.l.b16 %v738
    %v1441 = vunpack.c.l.b16 %v739
    %v1442 = vunpack.c.h.b16 %v739
    %v1443 = vunpack.c.l.b16 %v740
    %v1444 = vunpack.c.h.b16 %v740
    %v1445 = vunpack.c.l.b16 %v741
    %v1446 = vunpack.c.h.b16 %v741
    %v1447 = vunpack.c.l.b16 %v742
    %v1448 = vunpack.c.l.b16 %v743
    %v1449 = vunpack.c.h.b16 %v743
    %v1450 = vunpack.c.l.b16 %v744
    %v1451 = vunpack.c.h.b16 %v744
    %v1452 = vunpack.c.l.b16 %v745
    %v1453 = vunpack.c.h.b16 %v745
    %v1454 = vunpack.c.l.b16 %v746
    %v1455 = vunpack.c.l.b16 %v747
    %v1456 = vunpack.c.h.b16 %v747
    %v1457 = vunpack.c.l.b16 %v748
    %v1458 = vunpack.c.h.b16 %v748
    %v1459 = vunpack.c.l.b16 %v749
    %v1460 = vunpack.c.h.b16 %v749
    %v1461 = vunpack.c.l.b16 %v750
    %v1462 = vunpack.c.l.b16 %v751
    %v1463 = vunpack.c.h.b16 %v751
    %v1464 = vunpack.c.l.b16 %v752
    %v1465 = vunpack.c.h.b16 %v752
    %v1466 = vunpack.c.l.b16 %v753
    %v1467 = vunpack.c.h.b16 %v753
    %v1468 = vunpack.c.l.b16 %v754
    %v1469 = vunpack.c.l.b16 %v755
    %v1470 = vunpack.c.h.b16 %v755
    %v1471 = vunpack.c.l.b16 %v756
    %v1472 = vunpack.c.h.b16 %v756
    %v1473 = vunpack.c.l.b16 %v757
    %v1474 = vunpack.c.h.b16 %v757
    %v1475 = vunpack.c.l.b16 %v758
    %v1476 = vunpack.c.l.b16 %v759
    %v1477 = vunpack.c.h.b16 %v759
    %v1478 = vunpack.c.l.b16 %v760
    %v1479 = vunpack.c.h.b16 %v760
    %v1480 = vunpack.c.l.b16 %v761
    %v1481 = vunpack.c.h.b16 %v761
    %v1482 = vunpack.c.l.b16 %v762
    %v1483 = vunpack.c.l.b16 %v763
    %v1484 = vunpack.c.h.b16 %v763
    %v1485 = vunpack.c.l.b16 %v764
    %v1486 = vunpack.c.h.b16 %v764
    %v1487 = vunpack.c.l.b16 %v765
    %v1488 = vunpack.c.h.b16 %v765
    %v1489 = vunpack.c.l.b16 %v766
    %v1490 = vunpack.c.l.b16 %v767
    %v1491 = vunpack.c.h.b16 %v767
    %v1492 = vunpack.c.l.b16 %v768
    %v1493 = vunpack.c.h.b16 %v768
    %v1494 = vunpack.c.l.b16 %v769
    %v1495 = vunpack.c.h.b16 %v769
    %v1496 = vunpack.c.l.b16 %v770
    %v1497 = vunpack.c.l.b16 %v771
    %v1498 = vunpack.c.h.b16 %v771
    %v1499 = vunpack.c.l.b16 %v772
    %v1500 = vunpack.c.h.b16 %v772
    %v1501 = vunpack.c.l.b16 %v773
    %v1502 = vunpack.c.h.b16 %v773
    %v1503 = vunpack.c.l.b16 %v774
    %v1504 = vunpack.c.l.b16 %v775
    %v1505 = vunpack.c.h.b16 %v775
    %v1506 = vunpack.c.l.b16 %v776
    %v1507 = vunpack.c.h.b16 %v776
    %v1508 = vunpack.c.l.b16 %v777
    %v1509 = vunpack.c.h.b16 %v777
    %v1510 = vunpack.c.l.b16 %v778
    %v1511 = vunpack.c.l.b16 %v779
    %v1512 = vunpack.c.h.b16 %v779
    %v1513 = vunpack.c.l.b16 %v780
    %v1514 = vunpack.c.h.b16 %v780
    %v1515 = vunpack.c.l.b16 %v781
    %v1516 = vunpack.c.h.b16 %v781
    %v1517 = vunpack.c.l.b16 %v782
    %v1518 = vunpack.c.l.b16 %v783
    %v1519 = vunpack.c.h.b16 %v783
    %v1520 = vunpack.c.l.b16 %v784
    %v1521 = vunpack.c.h.b16 %v784
    %v1522 = vunpack.c.l.b16 %v785
    %v1523 = vunpack.c.h.b16 %v785
    %v1524 = vunpack.c.l.b16 %v786
    %v1525 = vunpack.c.l.b16 %v787
    %v1526 = vunpack.c.h.b16 %v787
    %v1527 = vunpack.c.l.b16 %v788
    %v1528 = vunpack.c.h.b16 %v788
    %v1529 = vunpack.c.l.b16 %v789
    %v1530 = vunpack.c.h.b16 %v789
    %v1531 = vunpack.c.l.b16 %v790
    %v1532 = vpack.c.b16 %v1091, %v1084
    %v1533 = vpack.c.b16 %v1092, %v1085
    %v1534 = vpack.c.b16 %v1093, %v1086
    %v1535 = vpack.c.b16 %v1094, %v1087
    %v1536 = vpack.c.b16 %v1095, %v1088
    %v1537 = vpack.c.b16 %v1096, %v1089
    %v1538 = vpack.c.b16 %v1097, %v1090
    %v1539 = vpack.c.b16 %v1105, %v1098
    %v1540 = vpack.c.b16 %v1106, %v1099
    %v1541 = vpack.c.b16 %v1107, %v1100
    %v1542 = vpack.c.b16 %v1108, %v1101
    %v1543 = vpack.c.b16 %v1109, %v1102
    %v1544 = vpack.c.b16 %v1110, %v1103
    %v1545 = vpack.c.b16 %v1111, %v1104
    %v1546 = vpack.c.b16 %v1119, %v1112
    %v1547 = vpack.c.b16 %v1120, %v1113
    %v1548 = vpack.c.b16 %v1121, %v1114
    %v1549 = vpack.c.b16 %v1122, %v1115
    %v1550 = vpack.c.b16 %v1123, %v1116
    %v1551 = vpack.c.b16 %v1124, %v1117
    %v1552 = vpack.c.b16 %v1125, %v1118
    %v1553 = vpack.c.b16 %v1133, %v1126
    %v1554 = vpack.c.b16 %v1134, %v1127
    %v1555 = vpack.c.b16 %v1135, %v1128
    %v1556 = vpack.c.b16 %v1136, %v1129
    %v1557 = vpack.c.b16 %v1137, %v1130
    %v1558 = vpack.c.b16 %v1138, %v1131
    %v1559 = vpack.c.b16 %v1139, %v1132
    %v1560 = vpack.c.b16 %v1147, %v1140
    %v1561 = vpack.c.b16 %v1148, %v1141
    %v1562 = vpack.c.b16 %v1149, %v1142
    %v1563 = vpack.c.b16 %v1150, %v1143
    %v1564 = vpack.c.b16 %v1151, %v1144
    %v1565 = vpack.c.b16 %v1152, %v1145
    %v1566 = vpack.c.b16 %v1153, %v1146
    %v1567 = vpack.c.b16 %v1161, %v1154
    %v1568 = vpack.c.b16 %v1162, %v1155
    %v1569 = vpack.c.b16 %v1163, %v1156
    %v1570 = vpack.c.b16 %v1164, %v1157
    %v1571 = vpack.c.b16 %v1165, %v1158
    %v1572 = vpack.c.b16 %v1166, %v1159
    %v1573 = vpack.c.b16 %v1167, %v1160
    %v1574 = vpack.c.b16 %v1175, %v1168
    %v1575 = vpack.c.b16 %v1176, %v1169
    %v1576 = vpack.c.b16 %v1177, %v1170
    %v1577 = vpack.c.b16 %v1178, %v1171
    %v1578 = vpack.c.b16 %v1179, %v1172
    %v1579 = vpack.c.b16 %v1180, %v1173
    %v1580 = vpack.c.b16 %v1181, %v1174
    %v1581 = vpack.c.b16 %v1189, %v1182
    %v1582 = vpack.c.b16 %v1190, %v1183
    %v1583 = vpack.c.b16 %v1191, %v1184
    %v1584 = vpack.c.b16 %v1192, %v1185
    %v1585 = vpack.c.b16 %v1193, %v1186
    %v1586 = vpack.c.b16 %v1194, %v1187
    %v1587 = vpack.c.b16 %v1195, %v1188
    %v1588 = vpack.c.b16 %v1203, %v1196
    %v1589 = vpack.c.b16 %v1204, %v1197
    %v1590 = vpack.c.b16 %v1205, %v1198
    %v1591 = vpack.c.b16 %v1206, %v1199
    %v1592 = vpack.c.b16 %v1207, %v1200
    %v1593 = vpack.c.b16 %v1208, %v1201
    %v1594 = vpack.c.b16 %v1209, %v1202
    %v1595 = vpack.c.b16 %v1217, %v1210
    %v1596 = vpack.c.b16 %v1218, %v1211
    %v1597 = vpack.c.b16 %v1219, %v1212
    %v1598 = vpack.c.b16 %v1220, %v1213
    %v1599 = vpack.c.b16 %v1221, %v1214
    %v1600 = vpack.c.b16 %v1222, %v1215
    %v1601 = vpack.c.b16 %v1223, %v1216
    %v1602 = vpack.c.b16 %v1231, %v1224
    %v1603 = vpack.c.b16 %v1232, %v1225
    %v1604 = vpack.c.b16 %v1233, %v1226
    %v1605 = vpack.c.b16 %v1234, %v1227
    %v1606 = vpack.c.b16 %v1235, %v1228
    %v1607 = vpack.c.b16 %v1236, %v1229
    %v1608 = vpack.c.b16 %v1237, %v1230
    %v1609 = vpack.c.b16 %v1245, %v1238
    %v1610 = vpack.c.b16 %v1246, %v1239
    %v1611 = vpack.c.b16 %v1247, %v1240
    %v1612 = vpack.c.b16 %v1248, %v1241
    %v1613 = vpack.c.b16 %v1249, %v1242
    %v1614 = vpack.c.b16 %v1250, %v1243
    %v1615 = vpack.c.b16 %v1251, %v1244
    %v1616 = vpack.c.b16 %v1259, %v1252
    %v1617 = vpack.c.b16 %v1260, %v1253
    %v1618 = vpack.c.b16 %v1261, %v1254
    %v1619 = vpack.c.b16 %v1262, %v1255
    %v1620 = vpack.c.b16 %v1263, %v1256
    %v1621 = vpack.c.b16 %v1264, %v1257
    %v1622 = vpack.c.b16 %v1265, %v1258
    %v1623 = vpack.c.b16 %v1273, %v1266
    %v1624 = vpack.c.b16 %v1274, %v1267
    %v1625 = vpack.c.b16 %v1275, %v1268
    %v1626 = vpack.c.b16 %v1276, %v1269
    %v1627 = vpack.c.b16 %v1277, %v1270
    %v1628 = vpack.c.b16 %v1278, %v1271
    %v1629 = vpack.c.b16 %v1279, %v1272
    %v1630 = vpack.c.b16 %v1287, %v1280
    %v1631 = vpack.c.b16 %v1288, %v1281
    %v1632 = vpack.c.b16 %v1289, %v1282
    %v1633 = vpack.c.b16 %v1290, %v1283
    %v1634 = vpack.c.b16 %v1291, %v1284
    %v1635 = vpack.c.b16 %v1292, %v1285
    %v1636 = vpack.c.b16 %v1293, %v1286
    %v1637 = vpack.c.b16 %v1301, %v1294
    %v1638 = vpack.c.b16 %v1302, %v1295
    %v1639 = vpack.c.b16 %v1303, %v1296
    %v1640 = vpack.c.b16 %v1304, %v1297
    %v1641 = vpack.c.b16 %v1305, %v1298
    %v1642 = vpack.c.b16 %v1306, %v1299
    %v1643 = vpack.c.b16 %v1307, %v1300
    %v1644 = vpack.c.b16 %v1315, %v1308
    %v1645 = vpack.c.b16 %v1316, %v1309
    %v1646 = vpack.c.b16 %v1317, %v1310
    %v1647 = vpack.c.b16 %v1318, %v1311
    %v1648 = vpack.c.b16 %v1319, %v1312
    %v1649 = vpack.c.b16 %v1320, %v1313
    %v1650 = vpack.c.b16 %v1321, %v1314
    %v1651 = vpack.c.b16 %v1329, %v1322
    %v1652 = vpack.c.b16 %v1330, %v1323
    %v1653 = vpack.c.b16 %v1331, %v1324
    %v1654 = vpack.c.b16 %v1332, %v1325
    %v1655 = vpack.c.b16 %v1333, %v1326
    %v1656 = vpack.c.b16 %v1334, %v1327
    %v1657 = vpack.c.b16 %v1335, %v1328
    %v1658 = vpack.c.b16 %v1343, %v1336
    %v1659 = vpack.c.b16 %v1344, %v1337
    %v1660 = vpack.c.b16 %v1345, %v1338
    %v1661 = vpack.c.b16 %v1346, %v1339
    %v1662 = vpack.c.b16 %v1347, %v1340
    %v1663 = vpack.c.b16 %v1348, %v1341
    %v1664 = vpack.c.b16 %v1349, %v1342
    %v1665 = vpack.c.b16 %v1357, %v1350
    %v1666 = vpack.c.b16 %v1358, %v1351
    %v1667 = vpack.c.b16 %v1359, %v1352
    %v1668 = vpack.c.b16 %v1360, %v1353
    %v1669 = vpack.c.b16 %v1361, %v1354
    %v1670 = vpack.c.b16 %v1362, %v1355
    %v1671 = vpack.c.b16 %v1363, %v1356
    %v1672 = vpack.c.b16 %v1371, %v1364
    %v1673 = vpack.c.b16 %v1372, %v1365
    %v1674 = vpack.c.b16 %v1373, %v1366
    %v1675 = vpack.c.b16 %v1374, %v1367
    %v1676 = vpack.c.b16 %v1375, %v1368
    %v1677 = vpack.c.b16 %v1376, %v1369
    %v1678 = vpack.c.b16 %v1377, %v1370
    %v1679 = vpack.c.b16 %v1385, %v1378
    %v1680 = vpack.c.b16 %v1386, %v1379
    %v1681 = vpack.c.b16 %v1387, %v1380
    %v1682 = vpack.c.b16 %v1388, %v1381
    %v1683 = vpack.c.b16 %v1389, %v1382
    %v1684 = vpack.c.b16 %v1390, %v1383
    %v1685 = vpack.c.b16 %v1391, %v1384
    %v1686 = vpack.c.b16 %v1399, %v1392
    %v1687 = vpack.c.b16 %v1400, %v1393
    %v1688 = vpack.c.b16 %v1401, %v1394
    %v1689 = vpack.c.b16 %v1402, %v1395
    %v1690 = vpack.c.b16 %v1403, %v1396
    %v1691 = vpack.c.b16 %v1404, %v1397
    %v1692 = vpack.c.b16 %v1405, %v1398
    %v1693 = vpack.c.b16 %v1413, %v1406
    %v1694 = vpack.c.b16 %v1414, %v1407
    %v1695 = vpack.c.b16 %v1415, %v1408
    %v1696 = vpack.c.b16 %v1416, %v1409
    %v1697 = vpack.c.b16 %v1417, %v1410
    %v1698 = vpack.c.b16 %v1418, %v1411
    %v1699 = vpack.c.b16 %v1419, %v1412
    %v1700 = vpack.c.b16 %v1427, %v1420
    %v1701 = vpack.c.b16 %v1428, %v1421
    %v1702 = vpack.c.b16 %v1429, %v1422
    %v1703 = vpack.c.b16 %v1430, %v1423
    %v1704 = vpack.c.b16 %v1431, %v1424
    %v1705 = vpack.c.b16 %v1432, %v1425
    %v1706 = vpack.c.b16 %v1433, %v1426
    %v1707 = vpack.c.b16 %v1441, %v1434
    %v1708 = vpack.c.b16 %v1442, %v1435
    %v1709 = vpack.c.b16 %v1443, %v1436
    %v1710 = vpack.c.b16 %v1444, %v1437
    %v1711 = vpack.c.b16 %v1445, %v1438
    %v1712 = vpack.c.b16 %v1446, %v1439
    %v1713 = vpack.c.b16 %v1447, %v1440
    %v1714 = vpack.c.b16 %v1455, %v1448
    %v1715 = vpack.c.b16 %v1456, %v1449
    %v1716 = vpack.c.b16 %v1457, %v1450
    %v1717 = vpack.c.b16 %v1458, %v1451
    %v1718 = vpack.c.b16 %v1459, %v1452
    %v1719 = vpack.c.b16 %v1460, %v1453
    %v1720 = vpack.c.b16 %v1461, %v1454
    %v1721 = vpack.c.b16 %v1469, %v1462
    %v1722 = vpack.c.b16 %v1470, %v1463
    %v1723 = vpack.c.b16 %v1471, %v1464
    %v1724 = vpack.c.b16 %v1472, %v1465
    %v1725 = vpack.c.b16 %v1473, %v1466
    %v1726 = vpack.c.b16 %v1474, %v1467
    %v1727 = vpack.c.b16 %v1475, %v1468
    %v1728 = vpack.c.b16 %v1483, %v1476
    %v1729 = vpack.c.b16 %v1484, %v1477
    %v1730 = vpack.c.b16 %v1485, %v1478
    %v1731 = vpack.c.b16 %v1486, %v1479
    %v1732 = vpack.c.b16 %v1487, %v1480
    %v1733 = vpack.c.b16 %v1488, %v1481
    %v1734 = vpack.c.b16 %v1489, %v1482
    %v1735 = vpack.c.b16 %v1497, %v1490
    %v1736 = vpack.c.b16 %v1498, %v1491
    %v1737 = vpack.c.b16 %v1499, %v1492
    %v1738 = vpack.c.b16 %v1500, %v1493
    %v1739 = vpack.c.b16 %v1501, %v1494
    %v1740 = vpack.c.b16 %v1502, %v1495
    %v1741 = vpack.c.b16 %v1503, %v1496
    %v1742 = vpack.c.b16 %v1511, %v1504
    %v1743 = vpack.c.b16 %v1512, %v1505
    %v1744 = vpack.c.b16 %v1513, %v1506
    %v1745 = vpack.c.b16 %v1514, %v1507
    %v1746 = vpack.c.b16 %v1515, %v1508
    %v1747 = vpack.c.b16 %v1516, %v1509
    %v1748 = vpack.c.b16 %v1517, %v1510
    %v1749 = vpack.c.b16 %v1525, %v1518
    %v1750 = vpack.c.b16 %v1526, %v1519
    %v1751 = vpack.c.b16 %v1527, %v1520
    %v1752 = vpack.c.b16 %v1528, %v1521
    %v1753 = vpack.c.b16 %v1529, %v1522
    %v1754 = vpack.c.b16 %v1530, %v1523
    %v1755 = vpack.c.b16 %v1531, %v1524
    %1980 = vmatprep.subr.bf16.mxu0 %v1582
    %1981 = vmatpush1.bf16.msra.mxu0 %v1581
    %1982 = vmatprep.subr.bf16.mxu0 %v1575
    %1983 = vmatpush1.bf16.msra.mxu0 %v1574
    %1984 = vmatprep.subr.bf16.mxu0 %v1568
    %1985 = vmatpush1.bf16.msra.mxu0 %v1567
    %1986 = vmatprep.subr.bf16.mxu0 %v1561
    %1987 = vmatpush1.bf16.msra.mxu0 %v1560
    %1988 = vmatprep.subr.bf16.mxu0 %v1554
    %1989 = vmatpush1.bf16.msra.mxu0 %v1553
    %1990 = vmatprep.subr.bf16.mxu0 %v1547
    %1991 = vmatpush1.bf16.msra.mxu0 %v1546
    %1992 = vmatprep.subr.bf16.mxu0 %v1540
    %1993 = vmatpush1.bf16.msra.mxu0 %v1539
    %1994 = vmatprep.subr.bf16.mxu0 %v1533
    %1995 = vmatpush1.bf16.msra.mxu0 %v1532
    %1996 = vmatprep.subr.bf16.mxu0 %v1638
    %1997 = vmatpush2.bf16.msra.mxu0 %v1637
    %1998 = vmatprep.subr.bf16.mxu0 %v1631
    %1999 = vmatpush2.bf16.msra.mxu0 %v1630
    %2000 = vmatprep.subr.bf16.mxu0 %v1624
    %2001 = vmatpush2.bf16.msra.mxu0 %v1623
    %2002 = vmatprep.subr.bf16.mxu0 %v1617
    %2003 = vmatpush2.bf16.msra.mxu0 %v1616
    %2004 = vmatprep.subr.bf16.mxu0 %v1610
    %2005 = vmatpush2.bf16.msra.mxu0 %v1609
    %2006 = vmatprep.subr.bf16.mxu0 %v1603
    %2007 = vmatpush2.bf16.msra.mxu0 %v1602
    %2008 = vmatprep.subr.bf16.mxu0 %v1596
    %2009 = vmatpush2.bf16.msra.mxu0 %v1595
    %2010 = vmatprep.subr.bf16.mxu0 %v1589
    %2011 = vmatpush2.bf16.msra.mxu0 %v1588
    %2012 = vmatprep.mubr.bf16.mxu0 %v532
    %2013 = vmatmul.mubr.bf16.gmra.mxu0 %v531
    %v2014 = vpop.f32.mrf.mxu0
    %v2015 = vadd.f32 %v796, %v2014
    %v2016 = vpop.f32.mrf.mxu0
    %v2017 = vadd.f32 %v800, %v2016
    %v2018 = vpop.f32.mrf.mxu0
    %v2019 = vadd.f32 %v796, %v2018
    %v2020 = vpop.f32.mrf.mxu0
    %v2021 = vadd.f32 %v800, %v2020
    %2022 = vdwg.mxu0
    %2023 = vmatprep.subr.bf16.mxu0 %v1694
    %2024 = vmatpush1.bf16.msra.mxu0 %v1693
    %2025 = vmatprep.subr.bf16.mxu0 %v1687
    %2026 = vmatpush1.bf16.msra.mxu0 %v1686
    %2027 = vmatprep.subr.bf16.mxu0 %v1680
    %2028 = vmatpush1.bf16.msra.mxu0 %v1679
    %2029 = vmatprep.subr.bf16.mxu0 %v1673
    %2030 = vmatpush1.bf16.msra.mxu0 %v1672
    %2031 = vmatprep.subr.bf16.mxu0 %v1666
    %2032 = vmatpush1.bf16.msra.mxu0 %v1665
    %2033 = vmatprep.subr.bf16.mxu0 %v1659
    %2034 = vmatpush1.bf16.msra.mxu0 %v1658
    %2035 = vmatprep.subr.bf16.mxu0 %v1652
    %2036 = vmatpush1.bf16.msra.mxu0 %v1651
    %2037 = vmatprep.subr.bf16.mxu0 %v1645
    %2038 = vmatpush1.bf16.msra.mxu0 %v1644
    %2039 = vmatprep.subr.bf16.mxu0 %v1750
    %2040 = vmatpush2.bf16.msra.mxu0 %v1749
    %2041 = vmatprep.subr.bf16.mxu0 %v1743
    %2042 = vmatpush2.bf16.msra.mxu0 %v1742
    %2043 = vmatprep.subr.bf16.mxu0 %v1736
    %2044 = vmatpush2.bf16.msra.mxu0 %v1735
    %2045 = vmatprep.subr.bf16.mxu0 %v1729
    %2046 = vmatpush2.bf16.msra.mxu0 %v1728
    %2047 = vmatprep.subr.bf16.mxu0 %v1722
    %2048 = vmatpush2.bf16.msra.mxu0 %v1721
    %2049 = vmatprep.subr.bf16.mxu0 %v1715
    %2050 = vmatpush2.bf16.msra.mxu0 %v1714
    %2051 = vmatprep.subr.bf16.mxu0 %v1708
    %2052 = vmatpush2.bf16.msra.mxu0 %v1707
    %2053 = vmatprep.subr.bf16.mxu0 %v1701
    %2054 = vmatpush2.bf16.msra.mxu0 %v1700
    %2055 = vmatprep.mubr.bf16.mxu0 %v534
    %2056 = vmatmul.mubr.bf16.gmra.mxu0 %v533
    %v2057 = vpop.f32.mrf.mxu0
    %v2058 = vadd.f32 %v2015, %v2057
    %v2059 = vpop.f32.mrf.mxu0
    %v2060 = vadd.f32 %v2017, %v2059
    %v2061 = vpop.f32.mrf.mxu0
    %v2062 = vadd.f32 %v2019, %v2061
    %v2063 = vpop.f32.mrf.mxu0
    %v2064 = vadd.f32 %v2021, %v2063
    %2065 = vdwg.mxu0
    %2066 = vmatprep.subr.bf16.mxu0 %v1584
    %2067 = vmatpush1.bf16.msra.mxu0 %v1583
    %2068 = vmatprep.subr.bf16.mxu0 %v1577
    %2069 = vmatpush1.bf16.msra.mxu0 %v1576
    %2070 = vmatprep.subr.bf16.mxu0 %v1570
    %2071 = vmatpush1.bf16.msra.mxu0 %v1569
    %2072 = vmatprep.subr.bf16.mxu0 %v1563
    %2073 = vmatpush1.bf16.msra.mxu0 %v1562
    %2074 = vmatprep.subr.bf16.mxu0 %v1556
    %2075 = vmatpush1.bf16.msra.mxu0 %v1555
    %2076 = vmatprep.subr.bf16.mxu0 %v1549
    %2077 = vmatpush1.bf16.msra.mxu0 %v1548
    %2078 = vmatprep.subr.bf16.mxu0 %v1542
    %2079 = vmatpush1.bf16.msra.mxu0 %v1541
    %2080 = vmatprep.subr.bf16.mxu0 %v1535
    %2081 = vmatpush1.bf16.msra.mxu0 %v1534
    %2082 = vmatprep.subr.bf16.mxu0 %v1640
    %2083 = vmatpush2.bf16.msra.mxu0 %v1639
    %2084 = vmatprep.subr.bf16.mxu0 %v1633
    %2085 = vmatpush2.bf16.msra.mxu0 %v1632
    %2086 = vmatprep.subr.bf16.mxu0 %v1626
    %2087 = vmatpush2.bf16.msra.mxu0 %v1625
    %2088 = vmatprep.subr.bf16.mxu0 %v1619
    %2089 = vmatpush2.bf16.msra.mxu0 %v1618
    %2090 = vmatprep.subr.bf16.mxu0 %v1612
    %2091 = vmatpush2.bf16.msra.mxu0 %v1611
    %2092 = vmatprep.subr.bf16.mxu0 %v1605
    %2093 = vmatpush2.bf16.msra.mxu0 %v1604
    %2094 = vmatprep.subr.bf16.mxu0 %v1598
    %2095 = vmatpush2.bf16.msra.mxu0 %v1597
    %2096 = vmatprep.subr.bf16.mxu0 %v1591
    %2097 = vmatpush2.bf16.msra.mxu0 %v1590
    %2098 = vmatprep.mubr.bf16.mxu0 %v532
    %2099 = vmatmul.mubr.bf16.gmra.mxu0 %v531
    %v2100 = vpop.f32.mrf.mxu0
    %v2101 = vadd.f32 %v804, %v2100
    %v2102 = vpop.f32.mrf.mxu0
    %v2103 = vadd.f32 %v808, %v2102
    %v2104 = vpop.f32.mrf.mxu0
    %v2105 = vadd.f32 %v804, %v2104
    %v2106 = vpop.f32.mrf.mxu0
    %v2107 = vadd.f32 %v808, %v2106
    %2108 = vdwg.mxu0
    %2109 = vmatprep.subr.bf16.mxu0 %v1696
    %2110 = vmatpush1.bf16.msra.mxu0 %v1695
    %2111 = vmatprep.subr.bf16.mxu0 %v1689
    %2112 = vmatpush1.bf16.msra.mxu0 %v1688
    %2113 = vmatprep.subr.bf16.mxu0 %v1682
    %2114 = vmatpush1.bf16.msra.mxu0 %v1681
    %2115 = vmatprep.subr.bf16.mxu0 %v1675
    %2116 = vmatpush1.bf16.msra.mxu0 %v1674
    %2117 = vmatprep.subr.bf16.mxu0 %v1668
    %2118 = vmatpush1.bf16.msra.mxu0 %v1667
    %2119 = vmatprep.subr.bf16.mxu0 %v1661
    %2120 = vmatpush1.bf16.msra.mxu0 %v1660
    %2121 = vmatprep.subr.bf16.mxu0 %v1654
    %2122 = vmatpush1.bf16.msra.mxu0 %v1653
    %2123 = vmatprep.subr.bf16.mxu0 %v1647
    %2124 = vmatpush1.bf16.msra.mxu0 %v1646
    %2125 = vmatprep.subr.bf16.mxu0 %v1752
    %2126 = vmatpush2.bf16.msra.mxu0 %v1751
    %2127 = vmatprep.subr.bf16.mxu0 %v1745
    %2128 = vmatpush2.bf16.msra.mxu0 %v1744
    %2129 = vmatprep.subr.bf16.mxu0 %v1738
    %2130 = vmatpush2.bf16.msra.mxu0 %v1737
    %2131 = vmatprep.subr.bf16.mxu0 %v1731
    %2132 = vmatpush2.bf16.msra.mxu0 %v1730
    %2133 = vmatprep.subr.bf16.mxu0 %v1724
    %2134 = vmatpush2.bf16.msra.mxu0 %v1723
    %2135 = vmatprep.subr.bf16.mxu0 %v1717
    %2136 = vmatpush2.bf16.msra.mxu0 %v1716
    %2137 = vmatprep.subr.bf16.mxu0 %v1710
    %2138 = vmatpush2.bf16.msra.mxu0 %v1709
    %2139 = vmatprep.subr.bf16.mxu0 %v1703
    %2140 = vmatpush2.bf16.msra.mxu0 %v1702
    %2141 = vmatprep.mubr.bf16.mxu0 %v534
    %2142 = vmatmul.mubr.bf16.gmra.mxu0 %v533
    %v2143 = vpop.f32.mrf.mxu0
    %v2144 = vadd.f32 %v2101, %v2143
    %v2145 = vpop.f32.mrf.mxu0
    %v2146 = vadd.f32 %v2103, %v2145
    %v2147 = vpop.f32.mrf.mxu0
    %v2148 = vadd.f32 %v2105, %v2147
    %v2149 = vpop.f32.mrf.mxu0
    %v2150 = vadd.f32 %v2107, %v2149
    %2151 = vdwg.mxu0
    %2152 = vmatprep.subr.bf16.mxu0 %v1586
    %2153 = vmatpush1.bf16.msra.mxu0 %v1585
    %2154 = vmatprep.subr.bf16.mxu0 %v1579
    %2155 = vmatpush1.bf16.msra.mxu0 %v1578
    %2156 = vmatprep.subr.bf16.mxu0 %v1572
    %2157 = vmatpush1.bf16.msra.mxu0 %v1571
    %2158 = vmatprep.subr.bf16.mxu0 %v1565
    %2159 = vmatpush1.bf16.msra.mxu0 %v1564
    %2160 = vmatprep.subr.bf16.mxu0 %v1558
    %2161 = vmatpush1.bf16.msra.mxu0 %v1557
    %2162 = vmatprep.subr.bf16.mxu0 %v1551
    %2163 = vmatpush1.bf16.msra.mxu0 %v1550
    %2164 = vmatprep.subr.bf16.mxu0 %v1544
    %2165 = vmatpush1.bf16.msra.mxu0 %v1543
    %2166 = vmatprep.subr.bf16.mxu0 %v1537
    %2167 = vmatpush1.bf16.msra.mxu0 %v1536
    %2168 = vmatprep.subr.bf16.mxu0 %v1642
    %2169 = vmatpush2.bf16.msra.mxu0 %v1641
    %2170 = vmatprep.subr.bf16.mxu0 %v1635
    %2171 = vmatpush2.bf16.msra.mxu0 %v1634
    %2172 = vmatprep.subr.bf16.mxu0 %v1628
    %2173 = vmatpush2.bf16.msra.mxu0 %v1627
    %2174 = vmatprep.subr.bf16.mxu0 %v1621
    %2175 = vmatpush2.bf16.msra.mxu0 %v1620
    %2176 = vmatprep.subr.bf16.mxu0 %v1614
    %2177 = vmatpush2.bf16.msra.mxu0 %v1613
    %2178 = vmatprep.subr.bf16.mxu0 %v1607
    %2179 = vmatpush2.bf16.msra.mxu0 %v1606
    %2180 = vmatprep.subr.bf16.mxu0 %v1600
    %2181 = vmatpush2.bf16.msra.mxu0 %v1599
    %2182 = vmatprep.subr.bf16.mxu0 %v1593
    %2183 = vmatpush2.bf16.msra.mxu0 %v1592
    %2184 = vmatprep.mubr.bf16.mxu0 %v532
    %2185 = vmatmul.mubr.bf16.gmra.mxu0 %v531
    %v2186 = vpop.f32.mrf.mxu0
    %v2187 = vadd.f32 %v812, %v2186
    %v2188 = vpop.f32.mrf.mxu0
    %v2189 = vadd.f32 %v816, %v2188
    %v2190 = vpop.f32.mrf.mxu0
    %v2191 = vadd.f32 %v812, %v2190
    %v2192 = vpop.f32.mrf.mxu0
    %v2193 = vadd.f32 %v816, %v2192
    %2194 = vdwg.mxu0
    %2195 = vmatprep.subr.bf16.mxu0 %v1698
    %2196 = vmatpush1.bf16.msra.mxu0 %v1697
    %2197 = vmatprep.subr.bf16.mxu0 %v1691
    %2198 = vmatpush1.bf16.msra.mxu0 %v1690
    %2199 = vmatprep.subr.bf16.mxu0 %v1684
    %2200 = vmatpush1.bf16.msra.mxu0 %v1683
    %2201 = vmatprep.subr.bf16.mxu0 %v1677
    %2202 = vmatpush1.bf16.msra.mxu0 %v1676
    %2203 = vmatprep.subr.bf16.mxu0 %v1670
    %2204 = vmatpush1.bf16.msra.mxu0 %v1669
    %2205 = vmatprep.subr.bf16.mxu0 %v1663
    %2206 = vmatpush1.bf16.msra.mxu0 %v1662
    %2207 = vmatprep.subr.bf16.mxu0 %v1656
    %2208 = vmatpush1.bf16.msra.mxu0 %v1655
    %2209 = vmatprep.subr.bf16.mxu0 %v1649
    %2210 = vmatpush1.bf16.msra.mxu0 %v1648
    %2211 = vmatprep.subr.bf16.mxu0 %v1754
    %2212 = vmatpush2.bf16.msra.mxu0 %v1753
    %2213 = vmatprep.subr.bf16.mxu0 %v1747
    %2214 = vmatpush2.bf16.msra.mxu0 %v1746
    %2215 = vmatprep.subr.bf16.mxu0 %v1740
    %2216 = vmatpush2.bf16.msra.mxu0 %v1739
    %2217 = vmatprep.subr.bf16.mxu0 %v1733
    %2218 = vmatpush2.bf16.msra.mxu0 %v1732
    %2219 = vmatprep.subr.bf16.mxu0 %v1726
    %2220 = vmatpush2.bf16.msra.mxu0 %v1725
    %2221 = vmatprep.subr.bf16.mxu0 %v1719
    %2222 = vmatpush2.bf16.msra.mxu0 %v1718
    %2223 = vmatprep.subr.bf16.mxu0 %v1712
    %2224 = vmatpush2.bf16.msra.mxu0 %v1711
    %2225 = vmatprep.subr.bf16.mxu0 %v1705
    %2226 = vmatpush2.bf16.msra.mxu0 %v1704
    %2227 = vmatprep.mubr.bf16.mxu0 %v534
    %2228 = vmatmul.mubr.bf16.gmra.mxu0 %v533
    %v2229 = vpop.f32.mrf.mxu0
    %v2230 = vadd.f32 %v2187, %v2229
    %v2231 = vpop.f32.mrf.mxu0
    %v2232 = vadd.f32 %v2189, %v2231
    %v2233 = vpop.f32.mrf.mxu0
    %v2234 = vadd.f32 %v2191, %v2233
    %v2235 = vpop.f32.mrf.mxu0
    %v2236 = vadd.f32 %v2193, %v2235
    %2237 = vdwg.mxu0
    %2238 = vmatprep.subr.bf16.mxu0 0
    %2239 = vmatpush1.bf16.msra.mxu0 %v1587
    %2240 = vmatprep.subr.bf16.mxu0 0
    %2241 = vmatpush1.bf16.msra.mxu0 %v1580
    %2242 = vmatprep.subr.bf16.mxu0 0
    %2243 = vmatpush1.bf16.msra.mxu0 %v1573
    %2244 = vmatprep.subr.bf16.mxu0 0
    %2245 = vmatpush1.bf16.msra.mxu0 %v1566
    %2246 = vmatprep.subr.bf16.mxu0 0
    %2247 = vmatpush1.bf16.msra.mxu0 %v1559
    %2248 = vmatprep.subr.bf16.mxu0 0
    %2249 = vmatpush1.bf16.msra.mxu0 %v1552
    %2250 = vmatprep.subr.bf16.mxu0 0
    %2251 = vmatpush1.bf16.msra.mxu0 %v1545
    %2252 = vmatprep.subr.bf16.mxu0 0
    %2253 = vmatpush1.bf16.msra.mxu0 %v1538
    %2254 = vmatprep.subr.bf16.mxu0 0
    %2255 = vmatpush2.bf16.msra.mxu0 %v1643
    %2256 = vmatprep.subr.bf16.mxu0 0
    %2257 = vmatpush2.bf16.msra.mxu0 %v1636
    %2258 = vmatprep.subr.bf16.mxu0 0
    %2259 = vmatpush2.bf16.msra.mxu0 %v1629
    %2260 = vmatprep.subr.bf16.mxu0 0
    %2261 = vmatpush2.bf16.msra.mxu0 %v1622
    %2262 = vmatprep.subr.bf16.mxu0 0
    %2263 = vmatpush2.bf16.msra.mxu0 %v1615
    %2264 = vmatprep.subr.bf16.mxu0 0
    %2265 = vmatpush2.bf16.msra.mxu0 %v1608
    %2266 = vmatprep.subr.bf16.mxu0 0
    %2267 = vmatpush2.bf16.msra.mxu0 %v1601
    %2268 = vmatprep.subr.bf16.mxu0 0
    %2269 = vmatpush2.bf16.msra.mxu0 %v1594
    %2270 = vmatprep.mubr.bf16.mxu0 %v532
    %2271 = vmatmul.mubr.bf16.gmra.mxu0 %v531
    %v2272 = vpop.f32.mrf.mxu0
    %v2273 = vadd.f32 %v820, %v2272
    %v2274 = vpop.f32.mrf.mxu0
    %v2275 = vpop.f32.mrf.mxu0
    %v2276 = vadd.f32 %v820, %v2275
    %v2277 = vpop.f32.mrf.mxu0
    %2278 = vdwg.mxu0
    %2279 = vmatprep.subr.bf16.mxu0 0
    %2280 = vmatpush1.bf16.msra.mxu0 %v1699
    %2281 = vmatprep.subr.bf16.mxu0 0
    %2282 = vmatpush1.bf16.msra.mxu0 %v1692
    %2283 = vmatprep.subr.bf16.mxu0 0
    %2284 = vmatpush1.bf16.msra.mxu0 %v1685
    %2285 = vmatprep.subr.bf16.mxu0 0
    %2286 = vmatpush1.bf16.msra.mxu0 %v1678
    %2287 = vmatprep.subr.bf16.mxu0 0
    %2288 = vmatpush1.bf16.msra.mxu0 %v1671
    %2289 = vmatprep.subr.bf16.mxu0 0
    %2290 = vmatpush1.bf16.msra.mxu0 %v1664
    %2291 = vmatprep.subr.bf16.mxu0 0
    %2292 = vmatpush1.bf16.msra.mxu0 %v1657
    %2293 = vmatprep.subr.bf16.mxu0 0
    %2294 = vmatpush1.bf16.msra.mxu0 %v1650
    %2295 = vmatprep.subr.bf16.mxu0 0
    %2296 = vmatpush2.bf16.msra.mxu0 %v1755
    %2297 = vmatprep.subr.bf16.mxu0 0
    %2298 = vmatpush2.bf16.msra.mxu0 %v1748
    %2299 = vmatprep.subr.bf16.mxu0 0
    %2300 = vmatpush2.bf16.msra.mxu0 %v1741
    %2301 = vmatprep.subr.bf16.mxu0 0
    %2302 = vmatpush2.bf16.msra.mxu0 %v1734
    %2303 = vmatprep.subr.bf16.mxu0 0
    %2304 = vmatpush2.bf16.msra.mxu0 %v1727
    %2305 = vmatprep.subr.bf16.mxu0 0
    %2306 = vmatpush2.bf16.msra.mxu0 %v1720
    %2307 = vmatprep.subr.bf16.mxu0 0
    %2308 = vmatpush2.bf16.msra.mxu0 %v1713
    %2309 = vmatprep.subr.bf16.mxu0 0
    %2310 = vmatpush2.bf16.msra.mxu0 %v1706
    %2311 = vmatprep.mubr.bf16.mxu0 %v534
    %2312 = vmatmul.mubr.bf16.gmra.mxu0 %v533
    %v2313 = vpop.f32.mrf.mxu0
    %v2314 = vadd.f32 %v2273, %v2313
    %v2315 = vpop.f32.mrf.mxu0
    %v2316 = vpop.f32.mrf.mxu0
    %v2317 = vadd.f32 %v2276, %v2316
    %v2318 = vpop.f32.mrf.mxu0
    %2319 = vdwg.mxu0
    %v2320 = vxor.u32 %v2058, 2147483648
    %v2321 = vxor.u32 %v2060, 2147483648
    %v2322 = vxor.u32 %v2144, 2147483648
    %v2323 = vxor.u32 %v2146, 2147483648
    %v2324 = vxor.u32 %v2230, 2147483648
    %v2325 = vxor.u32 %v2232, 2147483648
    %v2326 = vxor.u32 %v2314, 2147483648
    %v2327 = vxor.u32 %v2062, 2147483648
    %v2328 = vxor.u32 %v2064, 2147483648
    %v2329 = vxor.u32 %v2148, 2147483648
    %v2330 = vxor.u32 %v2150, 2147483648
    %v2331 = vxor.u32 %v2234, 2147483648
    %v2332 = vxor.u32 %v2236, 2147483648
    %v2333 = vxor.u32 %v2317, 2147483648
    %v2334 = vmul.f32 %v2320, 1.442695
    %v2335 = vpow.pop %v2334
    %v2336 = vmul.f32 %v2321, 1.442695
    %v2337 = vpow.pop %v2336
    %v2338 = vmul.f32 %v2322, 1.442695
    %v2339 = vpow.pop %v2338
    %v2340 = vmul.f32 %v2323, 1.442695
    %v2341 = vpow.pop %v2340
    %v2342 = vmul.f32 %v2324, 1.442695
    %v2343 = vpow.pop %v2342
    %v2344 = vmul.f32 %v2325, 1.442695
    %v2345 = vpow.pop %v2344
    %v2346 = vmul.f32 %v2326, 1.442695
    %v2347 = vpow.pop %v2346
    %v2348 = vmul.f32 %v2327, 1.442695
    %v2349 = vpow.pop %v2348
    %v2350 = vmul.f32 %v2328, 1.442695
    %v2351 = vpow.pop %v2350
    %v2352 = vmul.f32 %v2329, 1.442695
    %v2353 = vpow.pop %v2352
    %v2354 = vmul.f32 %v2330, 1.442695
    %v2355 = vpow.pop %v2354
    %v2356 = vmul.f32 %v2331, 1.442695
    %v2357 = vpow.pop %v2356
    %v2358 = vmul.f32 %v2332, 1.442695
    %v2359 = vpow.pop %v2358
    %v2360 = vmul.f32 %v2333, 1.442695
    %v2361 = vpow.pop %v2360
    %v2362 = vadd.f32 %v2335, 1.0
    %v2363 = vadd.f32 %v2337, 1.0
    %v2364 = vadd.f32 %v2339, 1.0
    %v2365 = vadd.f32 %v2341, 1.0
    %v2366 = vadd.f32 %v2343, 1.0
    %v2367 = vadd.f32 %v2345, 1.0
    %v2368 = vadd.f32 %v2347, 1.0
    %v2369 = vadd.f32 %v2349, 1.0
    %v2370 = vadd.f32 %v2351, 1.0
    %v2371 = vadd.f32 %v2353, 1.0
    %v2372 = vadd.f32 %v2355, 1.0
    %v2373 = vadd.f32 %v2357, 1.0
    %v2374 = vadd.f32 %v2359, 1.0
    %v2375 = vadd.f32 %v2361, 1.0
    %v2376 = vrcp.pop %v2362
    %v2377 = vmul.f32 1.0, %v2376
    %v2378 = vrcp.pop %v2363
    %v2379 = vmul.f32 1.0, %v2378
    %v2380 = vrcp.pop %v2364
    %v2381 = vmul.f32 1.0, %v2380
    %v2382 = vrcp.pop %v2365
    %v2383 = vmul.f32 1.0, %v2382
    %v2384 = vrcp.pop %v2366
    %v2385 = vmul.f32 1.0, %v2384
    %v2386 = vrcp.pop %v2367
    %v2387 = vmul.f32 1.0, %v2386
    %v2388 = vrcp.pop %v2368
    %v2389 = vmul.f32 1.0, %v2388
    %v2390 = vrcp.pop %v2369
    %v2391 = vmul.f32 1.0, %v2390
    %v2392 = vrcp.pop %v2370
    %v2393 = vmul.f32 1.0, %v2392
    %v2394 = vrcp.pop %v2371
    %v2395 = vmul.f32 1.0, %v2394
    %v2396 = vrcp.pop %v2372
    %v2397 = vmul.f32 1.0, %v2396
    %v2398 = vrcp.pop %v2373
    %v2399 = vmul.f32 1.0, %v2398
    %v2400 = vrcp.pop %v2374
    %v2401 = vmul.f32 1.0, %v2400
    %v2402 = vrcp.pop %v2375
    %v2403 = vmul.f32 1.0, %v2402
    %2404 = vst [vmem:[#allocation7] sm:$0xff] %v2377
    %2405 = vst [vmem:[#allocation7 + $0x8] sm:$0xff] %v2379
    %2406 = vst [vmem:[#allocation7 + $0x10] sm:$0xff] %v2381
    %2407 = vst [vmem:[#allocation7 + $0x18] sm:$0xff] %v2383
    %2408 = vst [vmem:[#allocation7 + $0x20] sm:$0xff] %v2385
    %2409 = vst [vmem:[#allocation7 + $0x28] sm:$0xff] %v2387
    %2410 = vst [vmem:[#allocation7 + $0x30] sm:$0xff] %v2389
    %2411 = vst [vmem:[#allocation7 + $0x38] sm:$0xff] %v2391
    %2412 = vst [vmem:[#allocation7 + $0x40] sm:$0xff] %v2393
    %2413 = vst [vmem:[#allocation7 + $0x48] sm:$0xff] %v2395
    %2414 = vst [vmem:[#allocation7 + $0x50] sm:$0xff] %v2397
    %2415 = vst [vmem:[#allocation7 + $0x58] sm:$0xff] %v2399
    %2416 = vst [vmem:[#allocation7 + $0x60] sm:$0xff] %v2401
    %2417 = vst [vmem:[#allocation7 + $0x68] sm:$0xff] %v2403
    // Predicated region
    $region30: #{decoder_forward_padded.1} parent=1 // pred_check
      _
    $region31: #{decoder_forward_padded.1} parent=1 // pred_check_branch
      %2419 = sbr.rel (0) target = $region33
    $region32: #{decoder_forward_padded.1} parent=1 // pred_region
      %s2421 = ssub.s32 1792, 1792
      %2422 = vsyncadd [#allocation4], %s2421
      %s2423 = sshll.u32 [#allocation7], 4
      %s2424 = int_to_ptr.vmem [resolvable:$true] %s2423
      %2429 = dma.vmem_to_hbm [thread:$0]  %s2424, 1792, %s5, [#allocation4], 896, 896, 56
    $region33: #{decoder_forward_padded.1} parent=1 // pred_fallthru
      _
    // Predicated region
    $region34: #{decoder_forward_padded.1} parent=1 // pred_check
      _
    $region35: #{decoder_forward_padded.1} parent=1 // pred_check_branch
      %2431 = sbr.rel (0) target = $region37
    $region36: #{decoder_forward_padded.1} parent=1 // pred_region
      %2432 = dma.done [#allocation4], 1792
    $region37: #{decoder_forward_padded.1} parent=1 // pred_fallthru
      _
    %2433 = vsyncpa [#allocation3], 1
    %2434 = vsyncpa [#allocation6], 1
    %2435 = vsyncpa [#allocation4], 1

</llo_original>
